<compile_context>
chip_gen: v7x
topology: tpu7x:2x2x1
jax: 0.10.0
libtpu: 0.0.40
codegen_flags: <defaults>
</compile_context>

<pallas_src>
import functools

import jax
import jax.numpy as jnp
import numpy as np
from jax.experimental import pallas as pl
from jax.experimental.pallas import tpu as pltpu


def _spatial_attention_kernel(x_ref, w_ref, b_ref, o_ref, feat_ref, *, H, W, K, Nb):
    """Fused SpatialAttention for one (Nb, C, H, W) block.

    x_ref:    (Nb, C, H, W)            VMEM, native dtype
    w_ref:    (2*K*K,) f32             SMEM (Conv2d(2,1,K) weight, OIHW row-major)
    b_ref:    (1,)     f32             SMEM
    o_ref:    (Nb, C, H, W)            VMEM
    feat_ref: (2, Nb, H+2P, W+2P) f32  VMEM scratch (zero-padded [avg, max])
    """
    P = K // 2
    Hp, Wp = H + 2 * P, W + 2 * P

    # Channel statistics straight off the ref -- no f32 copy of the block is
    # kept live across the tap loop.
    avg = jnp.mean(x_ref[...], axis=1, dtype=jnp.float32)            # (Nb, H, W)
    mx = jnp.max(x_ref[...], axis=1).astype(jnp.float32)             # (Nb, H, W)

    # "Same" padding: zero only the thin P-wide border strips; the interior
    # is fully overwritten right after.  Done every step on purpose (each
    # core owns its own scratch under parallel/core-parallel grids).
    feat_ref[:, :, 0:P, :] = jnp.zeros((2, Nb, P, Wp), jnp.float32)
    feat_ref[:, :, P + H:Hp, :] = jnp.zeros((2, Nb, P, Wp), jnp.float32)
    feat_ref[:, :, :, 0:P] = jnp.zeros((2, Nb, Hp, P), jnp.float32)
    feat_ref[:, :, :, P + W:Wp] = jnp.zeros((2, Nb, Hp, P), jnp.float32)
    feat_ref[0, :, P:P + H, P:P + W] = avg
    feat_ref[1, :, P:P + H, P:P + W] = mx

    # 2xKxK tap multiply-accumulate on the VPU.  One VMEM load per (c, ky)
    # row slab (2*K loads total); the K lane windows come from the loaded
    # value, not from fresh unaligned ref loads.
    acc = jnp.zeros((Nb, H, W), jnp.float32) + b_ref[0]
    for c in range(2):
        for ky in range(K):
            slab = feat_ref[c, :, ky:ky + H, :]                       # (Nb, H, Wp)
            for kx in range(K):
                wt = w_ref[(c * K + ky) * K + kx]                     # SMEM scalar
                acc = acc + wt * slab[:, :, kx:kx + W]

    # sigmoid = 1 / (1 + exp(-acc)); exp sits on the EUP slot.  Flip
    # approx=True to move the divide fully onto the EUP if the VALU ever
    # becomes the binding slot.
    attn = pl.reciprocal(1.0 + jnp.exp(-acc), approx=False)          # (Nb, H, W)

    # Rescale against the native-dtype block re-read from VMEM.
    o_ref[...] = attn.astype(o_ref.dtype)[:, None, :, :] * x_ref[...]


def spatial_attention(x_nchw, conv_w, conv_b, *, kernel_size=7, core_parallel=False):
    """SpatialAttention forward.  x: (N,C,H,W); conv_w: (1,2,K,K); conv_b: (1,)."""
    N, C, H, W = x_nchw.shape
    K = kernel_size
    assert conv_w.shape == (1, 2, K, K)
    assert conv_b.shape == (1,)
    P = K // 2

    # Flatten the weight to 1-D SMEM, (c, ky, kx) row-major (out-dim is 1).
    w_flat = conv_w.reshape(2 * K * K).astype(jnp.float32)
    b = conv_b.astype(jnp.float32)

    # Images per grid step: amortize per-step overhead by batching small
    # images while keeping the input block <= ~1 MiB so double-buffered
    # in+out blocks stay inside every generation's scoped VMEM budget.
    itemsize = jnp.dtype(x_nchw.dtype).itemsize
    per_image = C * H * W * itemsize
    nb = 1
    for cand in range(1, N + 1):
        if N % cand == 0 and cand * per_image <= (1 << 20):
            nb = cand

    # Explicit VMEM budget: double-buffered in/out blocks + scratch + slack,
    # instead of relying on the per-generation default (16 MiB v5e, 32 MiB
    # v6e/v7x; 64 MiB physical on v7x).
    blk = nb * per_image
    scratch = 2 * nb * (H + 2 * P) * (W + 2 * P) * 4
    vmem_limit = int(min(64 << 20, max(4 * blk + scratch + (1 << 20), 16 << 20)))

    # TODO(synk): for very large H add a second grid axis over row blocks with
    # a P-row halo so a single image can also span both v7x TensorCores.
    dim_sem = (pltpu.CORE_PARALLEL if core_parallel else "parallel",)

    kernel = functools.partial(_spatial_attention_kernel, H=H, W=W, K=K, Nb=nb)
    return pl.pallas_call(
        kernel,
        out_shape=jax.ShapeDtypeStruct((N, C, H, W), x_nchw.dtype),
        grid_spec=pltpu.PrefetchScalarGridSpec(
            num_scalar_prefetch=0,
            grid=(N // nb,),
            in_specs=[
                pl.BlockSpec((nb, C, H, W), lambda n: (n, 0, 0, 0)),
                pl.BlockSpec(memory_space=pltpu.MemorySpace.SMEM),
                pl.BlockSpec(memory_space=pltpu.MemorySpace.SMEM),
            ],
            out_specs=pl.BlockSpec((nb, C, H, W), lambda n: (n, 0, 0, 0)),
            scratch_shapes=[
                pltpu.VMEM((2, nb, H + 2 * P, W + 2 * P), jnp.float32),
            ],
        ),
        compiler_params=pltpu.CompilerParams(
            dimension_semantics=dim_sem,
            vmem_limit_bytes=vmem_limit,
        ),
    )(x_nchw, w_flat, b)


# ----------------------------------------------------------------------------
# Pure-JAX reference (independent formulation) for correctness checking.
# ----------------------------------------------------------------------------
def reference(x, conv_w, conv_b):
    avg = jnp.mean(x, axis=1, keepdims=True)
    mx = jnp.max(x, axis=1, keepdims=True)
    feat = jnp.concatenate([avg, mx], axis=1)              # (N, 2, H, W)
    P = conv_w.shape[-1] // 2
    out = jax.lax.conv_general_dilated(
        feat, conv_w, window_strides=(1, 1), padding=((P, P), (P, P)),
        dimension_numbers=("NCHW", "OIHW", "NCHW"))
    out = out + conv_b[None, :, None, None]
    return jax.nn.sigmoid(out) * x


if __name__ == "__main__":
    key = jax.random.PRNGKey(0)
    k1, k2, k3 = jax.random.split(key, 3)

    N, C, H, W = 2, 4, 16, 16
    K = 7

    x = jax.random.normal(k1, (N, C, H, W), dtype=jnp.float32)
    conv_w = 0.1 * jax.random.normal(k2, (1, 2, K, K), dtype=jnp.float32)
    conv_b = 0.1 * jax.random.normal(k3, (1,), dtype=jnp.float32)

    out = jax.block_until_ready(spatial_attention(x, conv_w, conv_b, kernel_size=K))
    assert out.shape == (N, C, H, W), out.shape

    ref = jax.block_until_ready(reference(x, conv_w, conv_b))
    np.testing.assert_allclose(np.asarray(out), np.asarray(ref),
                               rtol=1e-4, atol=1e-5)
    print("KERNEL_OK")
</pallas_src>

<mosaic_0001>
module attributes {stable_mosaic.version = 11 : i64} {
  func.func @_spatial_attention_kernel(%arg0: i32, %arg1: memref<2x4x16x16xf32, #tpu.memory_space<vmem>>, %arg2: memref<98xf32, #tpu.memory_space<smem>>, %arg3: memref<1xf32, #tpu.memory_space<smem>>, %arg4: memref<2x4x16x16xf32, #tpu.memory_space<vmem>>, %arg5: memref<2x2x22x22xf32, #tpu.memory_space<vmem>>) attributes {dimension_semantics = [#tpu.dimension_semantics<parallel>], iteration_bounds = array<i64: 1>, scalar_prefetch = 0 : i64, scratch_operands = 1 : i64, tpu.core_type = #tpu.core_type<tc>, window_params = [{transform_indices = @transform_0, window_bounds = array<i64: 2, 4, 16, 16>}, {transform_indices = @transform_1, window_bounds = array<i64: 98>}, {transform_indices = @transform_2, window_bounds = array<i64: 1>}, {transform_indices = @transform_3, window_bounds = array<i64: 2, 4, 16, 16>}]} {
    %c0 = arith.constant 0 : index
    %c0_0 = arith.constant 0 : index
    %c0_1 = arith.constant 0 : index
    %c0_2 = arith.constant 0 : index
    %0 = vector.load %arg1[%c0, %c0_0, %c0_1, %c0_2] : memref<2x4x16x16xf32, #tpu.memory_space<vmem>>, vector<2x4x16x16xf32>
    %cst = arith.constant dense<0.000000e+00> : vector<2x16x16xf32>
    %1 = vector.multi_reduction <add>, %0, %cst [1] : vector<2x4x16x16xf32> to vector<2x16x16xf32>
    %cst_3 = arith.constant 4.000000e+00 : f32
    %2 = vector.broadcast %cst_3 : f32 to vector<2x16x16xf32>
    %3 = arith.divf %1, %2 : vector<2x16x16xf32>
    %c0_4 = arith.constant 0 : index
    %c0_5 = arith.constant 0 : index
    %c0_6 = arith.constant 0 : index
    %c0_7 = arith.constant 0 : index
    %4 = vector.load %arg1[%c0_4, %c0_5, %c0_6, %c0_7] : memref<2x4x16x16xf32, #tpu.memory_space<vmem>>, vector<2x4x16x16xf32>
    %cst_8 = arith.constant dense<0xFF800000> : vector<2x16x16xf32>
    %5 = vector.multi_reduction <maximumf>, %4, %cst_8 [1] : vector<2x4x16x16xf32> to vector<2x16x16xf32>
    %cst_9 = arith.constant 0.000000e+00 : f32
    %6 = vector.broadcast %cst_9 : f32 to vector<2x2x3x22xf32>
    %c0_10 = arith.constant 0 : index
    %c0_11 = arith.constant 0 : index
    %c0_12 = arith.constant 0 : index
    %c0_13 = arith.constant 0 : index
    %7 = vector.load %arg5[%c0_10, %c0_11, %c0_12, %c0_13] : memref<2x2x22x22xf32, #tpu.memory_space<vmem>>, vector<2x2x3x22xf32>
    tpu.vector_store %arg5[%c0_10, %c0_11, %c0_12, %c0_13], %6 {strides = array<i32>} : memref<2x2x22x22xf32, #tpu.memory_space<vmem>>, vector<2x2x3x22xf32>,
    %cst_14 = arith.constant 0.000000e+00 : f32
    %8 = vector.broadcast %cst_14 : f32 to vector<2x2x3x22xf32>
    %c0_15 = arith.constant 0 : index
    %c0_16 = arith.constant 0 : index
    %c19 = arith.constant 19 : index
    %c0_17 = arith.constant 0 : index
    %9 = vector.load %arg5[%c0_15, %c0_16, %c19, %c0_17] : memref<2x2x22x22xf32, #tpu.memory_space<vmem>>, vector<2x2x3x22xf32>
    tpu.vector_store %arg5[%c0_15, %c0_16, %c19, %c0_17], %8 {strides = array<i32>} : memref<2x2x22x22xf32, #tpu.memory_space<vmem>>, vector<2x2x3x22xf32>,
    %cst_18 = arith.constant 0.000000e+00 : f32
    %10 = vector.broadcast %cst_18 : f32 to vector<2x2x22x3xf32>
    %c0_19 = arith.constant 0 : index
    %c0_20 = arith.constant 0 : index
    %c0_21 = arith.constant 0 : index
    %c0_22 = arith.constant 0 : index
    %11 = vector.load %arg5[%c0_19, %c0_20, %c0_21, %c0_22] : memref<2x2x22x22xf32, #tpu.memory_space<vmem>>, vector<2x2x22x3xf32>
    tpu.vector_store %arg5[%c0_19, %c0_20, %c0_21, %c0_22], %10 {strides = array<i32>} : memref<2x2x22x22xf32, #tpu.memory_space<vmem>>, vector<2x2x22x3xf32>,
    %cst_23 = arith.constant 0.000000e+00 : f32
    %12 = vector.broadcast %cst_23 : f32 to vector<2x2x22x3xf32>
    %c0_24 = arith.constant 0 : index
    %c0_25 = arith.constant 0 : index
    %c0_26 = arith.constant 0 : index
    %c19_27 = arith.constant 19 : index
    %13 = vector.load %arg5[%c0_24, %c0_25, %c0_26, %c19_27] : memref<2x2x22x22xf32, #tpu.memory_space<vmem>>, vector<2x2x22x3xf32>
    tpu.vector_store %arg5[%c0_24, %c0_25, %c0_26, %c19_27], %12 {strides = array<i32>} : memref<2x2x22x22xf32, #tpu.memory_space<vmem>>, vector<2x2x22x3xf32>,
    %c0_28 = arith.constant 0 : index
    %c0_29 = arith.constant 0 : index
    %c3 = arith.constant 3 : index
    %c3_30 = arith.constant 3 : index
    %14 = vector.load %arg5[%c0_28, %c0_29, %c3, %c3_30] : memref<2x2x22x22xf32, #tpu.memory_space<vmem>>, vector<1x2x16x16xf32>
    %15 = vector.shape_cast %14 : vector<1x2x16x16xf32> to vector<2x16x16xf32>
    %16 = vector.shape_cast %3 : vector<2x16x16xf32> to vector<1x2x16x16xf32>
    tpu.vector_store %arg5[%c0_28, %c0_29, %c3, %c3_30], %16 {strides = array<i32>} : memref<2x2x22x22xf32, #tpu.memory_space<vmem>>, vector<1x2x16x16xf32>,
    %c1 = arith.constant 1 : index
    %c0_31 = arith.constant 0 : index
    %c3_32 = arith.constant 3 : index
    %c3_33 = arith.constant 3 : index
    %17 = vector.load %arg5[%c1, %c0_31, %c3_32, %c3_33] : memref<2x2x22x22xf32, #tpu.memory_space<vmem>>, vector<1x2x16x16xf32>
    %18 = vector.shape_cast %17 : vector<1x2x16x16xf32> to vector<2x16x16xf32>
    %19 = vector.shape_cast %5 : vector<2x16x16xf32> to vector<1x2x16x16xf32>
    tpu.vector_store %arg5[%c1, %c0_31, %c3_32, %c3_33], %19 {strides = array<i32>} : memref<2x2x22x22xf32, #tpu.memory_space<vmem>>, vector<1x2x16x16xf32>,
    %cst_34 = arith.constant 0.000000e+00 : f32
    %20 = vector.broadcast %cst_34 : f32 to vector<2x16x16xf32>
    %c0_35 = arith.constant 0 : index
    %21 = memref.load %arg3[%c0_35] : memref<1xf32, #tpu.memory_space<smem>>
    %22 = vector.broadcast %21 : f32 to vector<2x16x16xf32>
    %23 = arith.addf %20, %22 : vector<2x16x16xf32>
    %c0_36 = arith.constant 0 : index
    %c0_37 = arith.constant 0 : index
    %c0_38 = arith.constant 0 : index
    %c0_39 = arith.constant 0 : index
    %24 = vector.load %arg5[%c0_36, %c0_37, %c0_38, %c0_39] : memref<2x2x22x22xf32, #tpu.memory_space<vmem>>, vector<1x2x16x22xf32>
    %25 = vector.shape_cast %24 : vector<1x2x16x22xf32> to vector<2x16x22xf32>
    %c0_40 = arith.constant 0 : index
    %26 = memref.load %arg2[%c0_40] : memref<98xf32, #tpu.memory_space<smem>>
    %27 = vector.extract_strided_slice %25 {offsets = [0, 0, 0], sizes = [2, 16, 16], strides = [1, 1, 1]} : vector<2x16x22xf32> to vector<2x16x16xf32>
    %28 = vector.broadcast %26 : f32 to vector<2x16x16xf32>
    %29 = arith.mulf %28, %27 : vector<2x16x16xf32>
    %30 = arith.addf %23, %29 : vector<2x16x16xf32>
    %c1_41 = arith.constant 1 : index
    %31 = memref.load %arg2[%c1_41] : memref<98xf32, #tpu.memory_space<smem>>
    %32 = vector.extract_strided_slice %25 {offsets = [0, 0, 1], sizes = [2, 16, 16], strides = [1, 1, 1]} : vector<2x16x22xf32> to vector<2x16x16xf32>
    %33 = vector.broadcast %31 : f32 to vector<2x16x16xf32>
    %34 = arith.mulf %33, %32 : vector<2x16x16xf32>
    %35 = arith.addf %30, %34 : vector<2x16x16xf32>
    %c2 = arith.constant 2 : index
    %36 = memref.load %arg2[%c2] : memref<98xf32, #tpu.memory_space<smem>>
    %37 = vector.extract_strided_slice %25 {offsets = [0, 0, 2], sizes = [2, 16, 16], strides = [1, 1, 1]} : vector<2x16x22xf32> to vector<2x16x16xf32>
    %38 = vector.broadcast %36 : f32 to vector<2x16x16xf32>
    %39 = arith.mulf %38, %37 : vector<2x16x16xf32>
    %40 = arith.addf %35, %39 : vector<2x16x16xf32>
    %c3_42 = arith.constant 3 : index
    %41 = memref.load %arg2[%c3_42] : memref<98xf32, #tpu.memory_space<smem>>
    %42 = vector.extract_strided_slice %25 {offsets = [0, 0, 3], sizes = [2, 16, 16], strides = [1, 1, 1]} : vector<2x16x22xf32> to vector<2x16x16xf32>
    %43 = vector.broadcast %41 : f32 to vector<2x16x16xf32>
    %44 = arith.mulf %43, %42 : vector<2x16x16xf32>
    %45 = arith.addf %40, %44 : vector<2x16x16xf32>
    %c4 = arith.constant 4 : index
    %46 = memref.load %arg2[%c4] : memref<98xf32, #tpu.memory_space<smem>>
    %47 = vector.extract_strided_slice %25 {offsets = [0, 0, 4], sizes = [2, 16, 16], strides = [1, 1, 1]} : vector<2x16x22xf32> to vector<2x16x16xf32>
    %48 = vector.broadcast %46 : f32 to vector<2x16x16xf32>
    %49 = arith.mulf %48, %47 : vector<2x16x16xf32>
    %50 = arith.addf %45, %49 : vector<2x16x16xf32>
    %c5 = arith.constant 5 : index
    %51 = memref.load %arg2[%c5] : memref<98xf32, #tpu.memory_space<smem>>
    %52 = vector.extract_strided_slice %25 {offsets = [0, 0, 5], sizes = [2, 16, 16], strides = [1, 1, 1]} : vector<2x16x22xf32> to vector<2x16x16xf32>
    %53 = vector.broadcast %51 : f32 to vector<2x16x16xf32>
    %54 = arith.mulf %53, %52 : vector<2x16x16xf32>
    %55 = arith.addf %50, %54 : vector<2x16x16xf32>
    %c6 = arith.constant 6 : index
    %56 = memref.load %arg2[%c6] : memref<98xf32, #tpu.memory_space<smem>>
    %57 = vector.extract_strided_slice %25 {offsets = [0, 0, 6], sizes = [2, 16, 16], strides = [1, 1, 1]} : vector<2x16x22xf32> to vector<2x16x16xf32>
    %58 = vector.broadcast %56 : f32 to vector<2x16x16xf32>
    %59 = arith.mulf %58, %57 : vector<2x16x16xf32>
    %60 = arith.addf %55, %59 : vector<2x16x16xf32>
    %c0_43 = arith.constant 0 : index
    %c0_44 = arith.constant 0 : index
    %c1_45 = arith.constant 1 : index
    %c0_46 = arith.constant 0 : index
    %61 = vector.load %arg5[%c0_43, %c0_44, %c1_45, %c0_46] : memref<2x2x22x22xf32, #tpu.memory_space<vmem>>, vector<1x2x16x22xf32>
    %62 = vector.shape_cast %61 : vector<1x2x16x22xf32> to vector<2x16x22xf32>
    %c7 = arith.constant 7 : index
    %63 = memref.load %arg2[%c7] : memref<98xf32, #tpu.memory_space<smem>>
    %64 = vector.extract_strided_slice %62 {offsets = [0, 0, 0], sizes = [2, 16, 16], strides = [1, 1, 1]} : vector<2x16x22xf32> to vector<2x16x16xf32>
    %65 = vector.broadcast %63 : f32 to vector<2x16x16xf32>
    %66 = arith.mulf %65, %64 : vector<2x16x16xf32>
    %67 = arith.addf %60, %66 : vector<2x16x16xf32>
    %c8 = arith.constant 8 : index
    %68 = memref.load %arg2[%c8] : memref<98xf32, #tpu.memory_space<smem>>
    %69 = vector.extract_strided_slice %62 {offsets = [0, 0, 1], sizes = [2, 16, 16], strides = [1, 1, 1]} : vector<2x16x22xf32> to vector<2x16x16xf32>
    %70 = vector.broadcast %68 : f32 to vector<2x16x16xf32>
    %71 = arith.mulf %70, %69 : vector<2x16x16xf32>
    %72 = arith.addf %67, %71 : vector<2x16x16xf32>
    %c9 = arith.constant 9 : index
    %73 = memref.load %arg2[%c9] : memref<98xf32, #tpu.memory_space<smem>>
    %74 = vector.extract_strided_slice %62 {offsets = [0, 0, 2], sizes = [2, 16, 16], strides = [1, 1, 1]} : vector<2x16x22xf32> to vector<2x16x16xf32>
    %75 = vector.broadcast %73 : f32 to vector<2x16x16xf32>
    %76 = arith.mulf %75, %74 : vector<2x16x16xf32>
    %77 = arith.addf %72, %76 : vector<2x16x16xf32>
    %c10 = arith.constant 10 : index
    %78 = memref.load %arg2[%c10] : memref<98xf32, #tpu.memory_space<smem>>
    %79 = vector.extract_strided_slice %62 {offsets = [0, 0, 3], sizes = [2, 16, 16], strides = [1, 1, 1]} : vector<2x16x22xf32> to vector<2x16x16xf32>
    %80 = vector.broadcast %78 : f32 to vector<2x16x16xf32>
    %81 = arith.mulf %80, %79 : vector<2x16x16xf32>
    %82 = arith.addf %77, %81 : vector<2x16x16xf32>
    %c11 = arith.constant 11 : index
    %83 = memref.load %arg2[%c11] : memref<98xf32, #tpu.memory_space<smem>>
    %84 = vector.extract_strided_slice %62 {offsets = [0, 0, 4], sizes = [2, 16, 16], strides = [1, 1, 1]} : vector<2x16x22xf32> to vector<2x16x16xf32>
    %85 = vector.broadcast %83 : f32 to vector<2x16x16xf32>
    %86 = arith.mulf %85, %84 : vector<2x16x16xf32>
    %87 = arith.addf %82, %86 : vector<2x16x16xf32>
    %c12 = arith.constant 12 : index
    %88 = memref.load %arg2[%c12] : memref<98xf32, #tpu.memory_space<smem>>
    %89 = vector.extract_strided_slice %62 {offsets = [0, 0, 5], sizes = [2, 16, 16], strides = [1, 1, 1]} : vector<2x16x22xf32> to vector<2x16x16xf32>
    %90 = vector.broadcast %88 : f32 to vector<2x16x16xf32>
    %91 = arith.mulf %90, %89 : vector<2x16x16xf32>
    %92 = arith.addf %87, %91 : vector<2x16x16xf32>
    %c13 = arith.constant 13 : index
    %93 = memref.load %arg2[%c13] : memref<98xf32, #tpu.memory_space<smem>>
    %94 = vector.extract_strided_slice %62 {offsets = [0, 0, 6], sizes = [2, 16, 16], strides = [1, 1, 1]} : vector<2x16x22xf32> to vector<2x16x16xf32>
    %95 = vector.broadcast %93 : f32 to vector<2x16x16xf32>
    %96 = arith.mulf %95, %94 : vector<2x16x16xf32>
    %97 = arith.addf %92, %96 : vector<2x16x16xf32>
    %c0_47 = arith.constant 0 : index
    %c0_48 = arith.constant 0 : index
    %c2_49 = arith.constant 2 : index
    %c0_50 = arith.constant 0 : index
    %98 = vector.load %arg5[%c0_47, %c0_48, %c2_49, %c0_50] : memref<2x2x22x22xf32, #tpu.memory_space<vmem>>, vector<1x2x16x22xf32>
    %99 = vector.shape_cast %98 : vector<1x2x16x22xf32> to vector<2x16x22xf32>
    %c14 = arith.constant 14 : index
    %100 = memref.load %arg2[%c14] : memref<98xf32, #tpu.memory_space<smem>>
    %101 = vector.extract_strided_slice %99 {offsets = [0, 0, 0], sizes = [2, 16, 16], strides = [1, 1, 1]} : vector<2x16x22xf32> to vector<2x16x16xf32>
    %102 = vector.broadcast %100 : f32 to vector<2x16x16xf32>
    %103 = arith.mulf %102, %101 : vector<2x16x16xf32>
    %104 = arith.addf %97, %103 : vector<2x16x16xf32>
    %c15 = arith.constant 15 : index
    %105 = memref.load %arg2[%c15] : memref<98xf32, #tpu.memory_space<smem>>
    %106 = vector.extract_strided_slice %99 {offsets = [0, 0, 1], sizes = [2, 16, 16], strides = [1, 1, 1]} : vector<2x16x22xf32> to vector<2x16x16xf32>
    %107 = vector.broadcast %105 : f32 to vector<2x16x16xf32>
    %108 = arith.mulf %107, %106 : vector<2x16x16xf32>
    %109 = arith.addf %104, %108 : vector<2x16x16xf32>
    %c16 = arith.constant 16 : index
    %110 = memref.load %arg2[%c16] : memref<98xf32, #tpu.memory_space<smem>>
    %111 = vector.extract_strided_slice %99 {offsets = [0, 0, 2], sizes = [2, 16, 16], strides = [1, 1, 1]} : vector<2x16x22xf32> to vector<2x16x16xf32>
    %112 = vector.broadcast %110 : f32 to vector<2x16x16xf32>
    %113 = arith.mulf %112, %111 : vector<2x16x16xf32>
    %114 = arith.addf %109, %113 : vector<2x16x16xf32>
    %c17 = arith.constant 17 : index
    %115 = memref.load %arg2[%c17] : memref<98xf32, #tpu.memory_space<smem>>
    %116 = vector.extract_strided_slice %99 {offsets = [0, 0, 3], sizes = [2, 16, 16], strides = [1, 1, 1]} : vector<2x16x22xf32> to vector<2x16x16xf32>
    %117 = vector.broadcast %115 : f32 to vector<2x16x16xf32>
    %118 = arith.mulf %117, %116 : vector<2x16x16xf32>
    %119 = arith.addf %114, %118 : vector<2x16x16xf32>
    %c18 = arith.constant 18 : index
    %120 = memref.load %arg2[%c18] : memref<98xf32, #tpu.memory_space<smem>>
    %121 = vector.extract_strided_slice %99 {offsets = [0, 0, 4], sizes = [2, 16, 16], strides = [1, 1, 1]} : vector<2x16x22xf32> to vector<2x16x16xf32>
    %122 = vector.broadcast %120 : f32 to vector<2x16x16xf32>
    %123 = arith.mulf %122, %121 : vector<2x16x16xf32>
    %124 = arith.addf %119, %123 : vector<2x16x16xf32>
    %c19_51 = arith.constant 19 : index
    %125 = memref.load %arg2[%c19_51] : memref<98xf32, #tpu.memory_space<smem>>
    %126 = vector.extract_strided_slice %99 {offsets = [0, 0, 5], sizes = [2, 16, 16], strides = [1, 1, 1]} : vector<2x16x22xf32> to vector<2x16x16xf32>
    %127 = vector.broadcast %125 : f32 to vector<2x16x16xf32>
    %128 = arith.mulf %127, %126 : vector<2x16x16xf32>
    %129 = arith.addf %124, %128 : vector<2x16x16xf32>
    %c20 = arith.constant 20 : index
    %130 = memref.load %arg2[%c20] : memref<98xf32, #tpu.memory_space<smem>>
    %131 = vector.extract_strided_slice %99 {offsets = [0, 0, 6], sizes = [2, 16, 16], strides = [1, 1, 1]} : vector<2x16x22xf32> to vector<2x16x16xf32>
    %132 = vector.broadcast %130 : f32 to vector<2x16x16xf32>
    %133 = arith.mulf %132, %131 : vector<2x16x16xf32>
    %134 = arith.addf %129, %133 : vector<2x16x16xf32>
    %c0_52 = arith.constant 0 : index
    %c0_53 = arith.constant 0 : index
    %c3_54 = arith.constant 3 : index
    %c0_55 = arith.constant 0 : index
    %135 = vector.load %arg5[%c0_52, %c0_53, %c3_54, %c0_55] : memref<2x2x22x22xf32, #tpu.memory_space<vmem>>, vector<1x2x16x22xf32>
    %136 = vector.shape_cast %135 : vector<1x2x16x22xf32> to vector<2x16x22xf32>
    %c21 = arith.constant 21 : index
    %137 = memref.load %arg2[%c21] : memref<98xf32, #tpu.memory_space<smem>>
    %138 = vector.extract_strided_slice %136 {offsets = [0, 0, 0], sizes = [2, 16, 16], strides = [1, 1, 1]} : vector<2x16x22xf32> to vector<2x16x16xf32>
    %139 = vector.broadcast %137 : f32 to vector<2x16x16xf32>
    %140 = arith.mulf %139, %138 : vector<2x16x16xf32>
    %141 = arith.addf %134, %140 : vector<2x16x16xf32>
    %c22 = arith.constant 22 : index
    %142 = memref.load %arg2[%c22] : memref<98xf32, #tpu.memory_space<smem>>
    %143 = vector.extract_strided_slice %136 {offsets = [0, 0, 1], sizes = [2, 16, 16], strides = [1, 1, 1]} : vector<2x16x22xf32> to vector<2x16x16xf32>
    %144 = vector.broadcast %142 : f32 to vector<2x16x16xf32>
    %145 = arith.mulf %144, %143 : vector<2x16x16xf32>
    %146 = arith.addf %141, %145 : vector<2x16x16xf32>
    %c23 = arith.constant 23 : index
    %147 = memref.load %arg2[%c23] : memref<98xf32, #tpu.memory_space<smem>>
    %148 = vector.extract_strided_slice %136 {offsets = [0, 0, 2], sizes = [2, 16, 16], strides = [1, 1, 1]} : vector<2x16x22xf32> to vector<2x16x16xf32>
    %149 = vector.broadcast %147 : f32 to vector<2x16x16xf32>
    %150 = arith.mulf %149, %148 : vector<2x16x16xf32>
    %151 = arith.addf %146, %150 : vector<2x16x16xf32>
    %c24 = arith.constant 24 : index
    %152 = memref.load %arg2[%c24] : memref<98xf32, #tpu.memory_space<smem>>
    %153 = vector.extract_strided_slice %136 {offsets = [0, 0, 3], sizes = [2, 16, 16], strides = [1, 1, 1]} : vector<2x16x22xf32> to vector<2x16x16xf32>
    %154 = vector.broadcast %152 : f32 to vector<2x16x16xf32>
    %155 = arith.mulf %154, %153 : vector<2x16x16xf32>
    %156 = arith.addf %151, %155 : vector<2x16x16xf32>
    %c25 = arith.constant 25 : index
    %157 = memref.load %arg2[%c25] : memref<98xf32, #tpu.memory_space<smem>>
    %158 = vector.extract_strided_slice %136 {offsets = [0, 0, 4], sizes = [2, 16, 16], strides = [1, 1, 1]} : vector<2x16x22xf32> to vector<2x16x16xf32>
    %159 = vector.broadcast %157 : f32 to vector<2x16x16xf32>
    %160 = arith.mulf %159, %158 : vector<2x16x16xf32>
    %161 = arith.addf %156, %160 : vector<2x16x16xf32>
    %c26 = arith.constant 26 : index
    %162 = memref.load %arg2[%c26] : memref<98xf32, #tpu.memory_space<smem>>
    %163 = vector.extract_strided_slice %136 {offsets = [0, 0, 5], sizes = [2, 16, 16], strides = [1, 1, 1]} : vector<2x16x22xf32> to vector<2x16x16xf32>
    %164 = vector.broadcast %162 : f32 to vector<2x16x16xf32>
    %165 = arith.mulf %164, %163 : vector<2x16x16xf32>
    %166 = arith.addf %161, %165 : vector<2x16x16xf32>
    %c27 = arith.constant 27 : index
    %167 = memref.load %arg2[%c27] : memref<98xf32, #tpu.memory_space<smem>>
    %168 = vector.extract_strided_slice %136 {offsets = [0, 0, 6], sizes = [2, 16, 16], strides = [1, 1, 1]} : vector<2x16x22xf32> to vector<2x16x16xf32>
    %169 = vector.broadcast %167 : f32 to vector<2x16x16xf32>
    %170 = arith.mulf %169, %168 : vector<2x16x16xf32>
    %171 = arith.addf %166, %170 : vector<2x16x16xf32>
    %c0_56 = arith.constant 0 : index
    %c0_57 = arith.constant 0 : index
    %c4_58 = arith.constant 4 : index
    %c0_59 = arith.constant 0 : index
    %172 = vector.load %arg5[%c0_56, %c0_57, %c4_58, %c0_59] : memref<2x2x22x22xf32, #tpu.memory_space<vmem>>, vector<1x2x16x22xf32>
    %173 = vector.shape_cast %172 : vector<1x2x16x22xf32> to vector<2x16x22xf32>
    %c28 = arith.constant 28 : index
    %174 = memref.load %arg2[%c28] : memref<98xf32, #tpu.memory_space<smem>>
    %175 = vector.extract_strided_slice %173 {offsets = [0, 0, 0], sizes = [2, 16, 16], strides = [1, 1, 1]} : vector<2x16x22xf32> to vector<2x16x16xf32>
    %176 = vector.broadcast %174 : f32 to vector<2x16x16xf32>
    %177 = arith.mulf %176, %175 : vector<2x16x16xf32>
    %178 = arith.addf %171, %177 : vector<2x16x16xf32>
    %c29 = arith.constant 29 : index
    %179 = memref.load %arg2[%c29] : memref<98xf32, #tpu.memory_space<smem>>
    %180 = vector.extract_strided_slice %173 {offsets = [0, 0, 1], sizes = [2, 16, 16], strides = [1, 1, 1]} : vector<2x16x22xf32> to vector<2x16x16xf32>
    %181 = vector.broadcast %179 : f32 to vector<2x16x16xf32>
    %182 = arith.mulf %181, %180 : vector<2x16x16xf32>
    %183 = arith.addf %178, %182 : vector<2x16x16xf32>
    %c30 = arith.constant 30 : index
    %184 = memref.load %arg2[%c30] : memref<98xf32, #tpu.memory_space<smem>>
    %185 = vector.extract_strided_slice %173 {offsets = [0, 0, 2], sizes = [2, 16, 16], strides = [1, 1, 1]} : vector<2x16x22xf32> to vector<2x16x16xf32>
    %186 = vector.broadcast %184 : f32 to vector<2x16x16xf32>
    %187 = arith.mulf %186, %185 : vector<2x16x16xf32>
    %188 = arith.addf %183, %187 : vector<2x16x16xf32>
    %c31 = arith.constant 31 : index
    %189 = memref.load %arg2[%c31] : memref<98xf32, #tpu.memory_space<smem>>
    %190 = vector.extract_strided_slice %173 {offsets = [0, 0, 3], sizes = [2, 16, 16], strides = [1, 1, 1]} : vector<2x16x22xf32> to vector<2x16x16xf32>
    %191 = vector.broadcast %189 : f32 to vector<2x16x16xf32>
    %192 = arith.mulf %191, %190 : vector<2x16x16xf32>
    %193 = arith.addf %188, %192 : vector<2x16x16xf32>
    %c32 = arith.constant 32 : index
    %194 = memref.load %arg2[%c32] : memref<98xf32, #tpu.memory_space<smem>>
    %195 = vector.extract_strided_slice %173 {offsets = [0, 0, 4], sizes = [2, 16, 16], strides = [1, 1, 1]} : vector<2x16x22xf32> to vector<2x16x16xf32>
    %196 = vector.broadcast %194 : f32 to vector<2x16x16xf32>
    %197 = arith.mulf %196, %195 : vector<2x16x16xf32>
    %198 = arith.addf %193, %197 : vector<2x16x16xf32>
    %c33 = arith.constant 33 : index
    %199 = memref.load %arg2[%c33] : memref<98xf32, #tpu.memory_space<smem>>
    %200 = vector.extract_strided_slice %173 {offsets = [0, 0, 5], sizes = [2, 16, 16], strides = [1, 1, 1]} : vector<2x16x22xf32> to vector<2x16x16xf32>
    %201 = vector.broadcast %199 : f32 to vector<2x16x16xf32>
    %202 = arith.mulf %201, %200 : vector<2x16x16xf32>
    %203 = arith.addf %198, %202 : vector<2x16x16xf32>
    %c34 = arith.constant 34 : index
    %204 = memref.load %arg2[%c34] : memref<98xf32, #tpu.memory_space<smem>>
    %205 = vector.extract_strided_slice %173 {offsets = [0, 0, 6], sizes = [2, 16, 16], strides = [1, 1, 1]} : vector<2x16x22xf32> to vector<2x16x16xf32>
    %206 = vector.broadcast %204 : f32 to vector<2x16x16xf32>
    %207 = arith.mulf %206, %205 : vector<2x16x16xf32>
    %208 = arith.addf %203, %207 : vector<2x16x16xf32>
    %c0_60 = arith.constant 0 : index
    %c0_61 = arith.constant 0 : index
    %c5_62 = arith.constant 5 : index
    %c0_63 = arith.constant 0 : index
    %209 = vector.load %arg5[%c0_60, %c0_61, %c5_62, %c0_63] : memref<2x2x22x22xf32, #tpu.memory_space<vmem>>, vector<1x2x16x22xf32>
    %210 = vector.shape_cast %209 : vector<1x2x16x22xf32> to vector<2x16x22xf32>
    %c35 = arith.constant 35 : index
    %211 = memref.load %arg2[%c35] : memref<98xf32, #tpu.memory_space<smem>>
    %212 = vector.extract_strided_slice %210 {offsets = [0, 0, 0], sizes = [2, 16, 16], strides = [1, 1, 1]} : vector<2x16x22xf32> to vector<2x16x16xf32>
    %213 = vector.broadcast %211 : f32 to vector<2x16x16xf32>
    %214 = arith.mulf %213, %212 : vector<2x16x16xf32>
    %215 = arith.addf %208, %214 : vector<2x16x16xf32>
    %c36 = arith.constant 36 : index
    %216 = memref.load %arg2[%c36] : memref<98xf32, #tpu.memory_space<smem>>
    %217 = vector.extract_strided_slice %210 {offsets = [0, 0, 1], sizes = [2, 16, 16], strides = [1, 1, 1]} : vector<2x16x22xf32> to vector<2x16x16xf32>
    %218 = vector.broadcast %216 : f32 to vector<2x16x16xf32>
    %219 = arith.mulf %218, %217 : vector<2x16x16xf32>
    %220 = arith.addf %215, %219 : vector<2x16x16xf32>
    %c37 = arith.constant 37 : index
    %221 = memref.load %arg2[%c37] : memref<98xf32, #tpu.memory_space<smem>>
    %222 = vector.extract_strided_slice %210 {offsets = [0, 0, 2], sizes = [2, 16, 16], strides = [1, 1, 1]} : vector<2x16x22xf32> to vector<2x16x16xf32>
    %223 = vector.broadcast %221 : f32 to vector<2x16x16xf32>
    %224 = arith.mulf %223, %222 : vector<2x16x16xf32>
    %225 = arith.addf %220, %224 : vector<2x16x16xf32>
    %c38 = arith.constant 38 : index
    %226 = memref.load %arg2[%c38] : memref<98xf32, #tpu.memory_space<smem>>
    %227 = vector.extract_strided_slice %210 {offsets = [0, 0, 3], sizes = [2, 16, 16], strides = [1, 1, 1]} : vector<2x16x22xf32> to vector<2x16x16xf32>
    %228 = vector.broadcast %226 : f32 to vector<2x16x16xf32>
    %229 = arith.mulf %228, %227 : vector<2x16x16xf32>
    %230 = arith.addf %225, %229 : vector<2x16x16xf32>
    %c39 = arith.constant 39 : index
    %231 = memref.load %arg2[%c39] : memref<98xf32, #tpu.memory_space<smem>>
    %232 = vector.extract_strided_slice %210 {offsets = [0, 0, 4], sizes = [2, 16, 16], strides = [1, 1, 1]} : vector<2x16x22xf32> to vector<2x16x16xf32>
    %233 = vector.broadcast %231 : f32 to vector<2x16x16xf32>
    %234 = arith.mulf %233, %232 : vector<2x16x16xf32>
    %235 = arith.addf %230, %234 : vector<2x16x16xf32>
    %c40 = arith.constant 40 : index
    %236 = memref.load %arg2[%c40] : memref<98xf32, #tpu.memory_space<smem>>
    %237 = vector.extract_strided_slice %210 {offsets = [0, 0, 5], sizes = [2, 16, 16], strides = [1, 1, 1]} : vector<2x16x22xf32> to vector<2x16x16xf32>
    %238 = vector.broadcast %236 : f32 to vector<2x16x16xf32>
    %239 = arith.mulf %238, %237 : vector<2x16x16xf32>
    %240 = arith.addf %235, %239 : vector<2x16x16xf32>
    %c41 = arith.constant 41 : index
    %241 = memref.load %arg2[%c41] : memref<98xf32, #tpu.memory_space<smem>>
    %242 = vector.extract_strided_slice %210 {offsets = [0, 0, 6], sizes = [2, 16, 16], strides = [1, 1, 1]} : vector<2x16x22xf32> to vector<2x16x16xf32>
    %243 = vector.broadcast %241 : f32 to vector<2x16x16xf32>
    %244 = arith.mulf %243, %242 : vector<2x16x16xf32>
    %245 = arith.addf %240, %244 : vector<2x16x16xf32>
    %c0_64 = arith.constant 0 : index
    %c0_65 = arith.constant 0 : index
    %c6_66 = arith.constant 6 : index
    %c0_67 = arith.constant 0 : index
    %246 = vector.load %arg5[%c0_64, %c0_65, %c6_66, %c0_67] : memref<2x2x22x22xf32, #tpu.memory_space<vmem>>, vector<1x2x16x22xf32>
    %247 = vector.shape_cast %246 : vector<1x2x16x22xf32> to vector<2x16x22xf32>
    %c42 = arith.constant 42 : index
    %248 = memref.load %arg2[%c42] : memref<98xf32, #tpu.memory_space<smem>>
    %249 = vector.extract_strided_slice %247 {offsets = [0, 0, 0], sizes = [2, 16, 16], strides = [1, 1, 1]} : vector<2x16x22xf32> to vector<2x16x16xf32>
    %250 = vector.broadcast %248 : f32 to vector<2x16x16xf32>
    %251 = arith.mulf %250, %249 : vector<2x16x16xf32>
    %252 = arith.addf %245, %251 : vector<2x16x16xf32>
    %c43 = arith.constant 43 : index
    %253 = memref.load %arg2[%c43] : memref<98xf32, #tpu.memory_space<smem>>
    %254 = vector.extract_strided_slice %247 {offsets = [0, 0, 1], sizes = [2, 16, 16], strides = [1, 1, 1]} : vector<2x16x22xf32> to vector<2x16x16xf32>
    %255 = vector.broadcast %253 : f32 to vector<2x16x16xf32>
    %256 = arith.mulf %255, %254 : vector<2x16x16xf32>
    %257 = arith.addf %252, %256 : vector<2x16x16xf32>
    %c44 = arith.constant 44 : index
    %258 = memref.load %arg2[%c44] : memref<98xf32, #tpu.memory_space<smem>>
    %259 = vector.extract_strided_slice %247 {offsets = [0, 0, 2], sizes = [2, 16, 16], strides = [1, 1, 1]} : vector<2x16x22xf32> to vector<2x16x16xf32>
    %260 = vector.broadcast %258 : f32 to vector<2x16x16xf32>
    %261 = arith.mulf %260, %259 : vector<2x16x16xf32>
    %262 = arith.addf %257, %261 : vector<2x16x16xf32>
    %c45 = arith.constant 45 : index
    %263 = memref.load %arg2[%c45] : memref<98xf32, #tpu.memory_space<smem>>
    %264 = vector.extract_strided_slice %247 {offsets = [0, 0, 3], sizes = [2, 16, 16], strides = [1, 1, 1]} : vector<2x16x22xf32> to vector<2x16x16xf32>
    %265 = vector.broadcast %263 : f32 to vector<2x16x16xf32>
    %266 = arith.mulf %265, %264 : vector<2x16x16xf32>
    %267 = arith.addf %262, %266 : vector<2x16x16xf32>
    %c46 = arith.constant 46 : index
    %268 = memref.load %arg2[%c46] : memref<98xf32, #tpu.memory_space<smem>>
    %269 = vector.extract_strided_slice %247 {offsets = [0, 0, 4], sizes = [2, 16, 16], strides = [1, 1, 1]} : vector<2x16x22xf32> to vector<2x16x16xf32>
    %270 = vector.broadcast %268 : f32 to vector<2x16x16xf32>
    %271 = arith.mulf %270, %269 : vector<2x16x16xf32>
    %272 = arith.addf %267, %271 : vector<2x16x16xf32>
    %c47 = arith.constant 47 : index
    %273 = memref.load %arg2[%c47] : memref<98xf32, #tpu.memory_space<smem>>
    %274 = vector.extract_strided_slice %247 {offsets = [0, 0, 5], sizes = [2, 16, 16], strides = [1, 1, 1]} : vector<2x16x22xf32> to vector<2x16x16xf32>
    %275 = vector.broadcast %273 : f32 to vector<2x16x16xf32>
    %276 = arith.mulf %275, %274 : vector<2x16x16xf32>
    %277 = arith.addf %272, %276 : vector<2x16x16xf32>
    %c48 = arith.constant 48 : index
    %278 = memref.load %arg2[%c48] : memref<98xf32, #tpu.memory_space<smem>>
    %279 = vector.extract_strided_slice %247 {offsets = [0, 0, 6], sizes = [2, 16, 16], strides = [1, 1, 1]} : vector<2x16x22xf32> to vector<2x16x16xf32>
    %280 = vector.broadcast %278 : f32 to vector<2x16x16xf32>
    %281 = arith.mulf %280, %279 : vector<2x16x16xf32>
    %282 = arith.addf %277, %281 : vector<2x16x16xf32>
    %c1_68 = arith.constant 1 : index
    %c0_69 = arith.constant 0 : index
    %c0_70 = arith.constant 0 : index
    %c0_71 = arith.constant 0 : index
    %283 = vector.load %arg5[%c1_68, %c0_69, %c0_70, %c0_71] : memref<2x2x22x22xf32, #tpu.memory_space<vmem>>, vector<1x2x16x22xf32>
    %284 = vector.shape_cast %283 : vector<1x2x16x22xf32> to vector<2x16x22xf32>
    %c49 = arith.constant 49 : index
    %285 = memref.load %arg2[%c49] : memref<98xf32, #tpu.memory_space<smem>>
    %286 = vector.extract_strided_slice %284 {offsets = [0, 0, 0], sizes = [2, 16, 16], strides = [1, 1, 1]} : vector<2x16x22xf32> to vector<2x16x16xf32>
    %287 = vector.broadcast %285 : f32 to vector<2x16x16xf32>
    %288 = arith.mulf %287, %286 : vector<2x16x16xf32>
    %289 = arith.addf %282, %288 : vector<2x16x16xf32>
    %c50 = arith.constant 50 : index
    %290 = memref.load %arg2[%c50] : memref<98xf32, #tpu.memory_space<smem>>
    %291 = vector.extract_strided_slice %284 {offsets = [0, 0, 1], sizes = [2, 16, 16], strides = [1, 1, 1]} : vector<2x16x22xf32> to vector<2x16x16xf32>
    %292 = vector.broadcast %290 : f32 to vector<2x16x16xf32>
    %293 = arith.mulf %292, %291 : vector<2x16x16xf32>
    %294 = arith.addf %289, %293 : vector<2x16x16xf32>
    %c51 = arith.constant 51 : index
    %295 = memref.load %arg2[%c51] : memref<98xf32, #tpu.memory_space<smem>>
    %296 = vector.extract_strided_slice %284 {offsets = [0, 0, 2], sizes = [2, 16, 16], strides = [1, 1, 1]} : vector<2x16x22xf32> to vector<2x16x16xf32>
    %297 = vector.broadcast %295 : f32 to vector<2x16x16xf32>
    %298 = arith.mulf %297, %296 : vector<2x16x16xf32>
    %299 = arith.addf %294, %298 : vector<2x16x16xf32>
    %c52 = arith.constant 52 : index
    %300 = memref.load %arg2[%c52] : memref<98xf32, #tpu.memory_space<smem>>
    %301 = vector.extract_strided_slice %284 {offsets = [0, 0, 3], sizes = [2, 16, 16], strides = [1, 1, 1]} : vector<2x16x22xf32> to vector<2x16x16xf32>
    %302 = vector.broadcast %300 : f32 to vector<2x16x16xf32>
    %303 = arith.mulf %302, %301 : vector<2x16x16xf32>
    %304 = arith.addf %299, %303 : vector<2x16x16xf32>
    %c53 = arith.constant 53 : index
    %305 = memref.load %arg2[%c53] : memref<98xf32, #tpu.memory_space<smem>>
    %306 = vector.extract_strided_slice %284 {offsets = [0, 0, 4], sizes = [2, 16, 16], strides = [1, 1, 1]} : vector<2x16x22xf32> to vector<2x16x16xf32>
    %307 = vector.broadcast %305 : f32 to vector<2x16x16xf32>
    %308 = arith.mulf %307, %306 : vector<2x16x16xf32>
    %309 = arith.addf %304, %308 : vector<2x16x16xf32>
    %c54 = arith.constant 54 : index
    %310 = memref.load %arg2[%c54] : memref<98xf32, #tpu.memory_space<smem>>
    %311 = vector.extract_strided_slice %284 {offsets = [0, 0, 5], sizes = [2, 16, 16], strides = [1, 1, 1]} : vector<2x16x22xf32> to vector<2x16x16xf32>
    %312 = vector.broadcast %310 : f32 to vector<2x16x16xf32>
    %313 = arith.mulf %312, %311 : vector<2x16x16xf32>
    %314 = arith.addf %309, %313 : vector<2x16x16xf32>
    %c55 = arith.constant 55 : index
    %315 = memref.load %arg2[%c55] : memref<98xf32, #tpu.memory_space<smem>>
    %316 = vector.extract_strided_slice %284 {offsets = [0, 0, 6], sizes = [2, 16, 16], strides = [1, 1, 1]} : vector<2x16x22xf32> to vector<2x16x16xf32>
    %317 = vector.broadcast %315 : f32 to vector<2x16x16xf32>
    %318 = arith.mulf %317, %316 : vector<2x16x16xf32>
    %319 = arith.addf %314, %318 : vector<2x16x16xf32>
    %c1_72 = arith.constant 1 : index
    %c0_73 = arith.constant 0 : index
    %c1_74 = arith.constant 1 : index
    %c0_75 = arith.constant 0 : index
    %320 = vector.load %arg5[%c1_72, %c0_73, %c1_74, %c0_75] : memref<2x2x22x22xf32, #tpu.memory_space<vmem>>, vector<1x2x16x22xf32>
    %321 = vector.shape_cast %320 : vector<1x2x16x22xf32> to vector<2x16x22xf32>
    %c56 = arith.constant 56 : index
    %322 = memref.load %arg2[%c56] : memref<98xf32, #tpu.memory_space<smem>>
    %323 = vector.extract_strided_slice %321 {offsets = [0, 0, 0], sizes = [2, 16, 16], strides = [1, 1, 1]} : vector<2x16x22xf32> to vector<2x16x16xf32>
    %324 = vector.broadcast %322 : f32 to vector<2x16x16xf32>
    %325 = arith.mulf %324, %323 : vector<2x16x16xf32>
    %326 = arith.addf %319, %325 : vector<2x16x16xf32>
    %c57 = arith.constant 57 : index
    %327 = memref.load %arg2[%c57] : memref<98xf32, #tpu.memory_space<smem>>
    %328 = vector.extract_strided_slice %321 {offsets = [0, 0, 1], sizes = [2, 16, 16], strides = [1, 1, 1]} : vector<2x16x22xf32> to vector<2x16x16xf32>
    %329 = vector.broadcast %327 : f32 to vector<2x16x16xf32>
    %330 = arith.mulf %329, %328 : vector<2x16x16xf32>
    %331 = arith.addf %326, %330 : vector<2x16x16xf32>
    %c58 = arith.constant 58 : index
    %332 = memref.load %arg2[%c58] : memref<98xf32, #tpu.memory_space<smem>>
    %333 = vector.extract_strided_slice %321 {offsets = [0, 0, 2], sizes = [2, 16, 16], strides = [1, 1, 1]} : vector<2x16x22xf32> to vector<2x16x16xf32>
    %334 = vector.broadcast %332 : f32 to vector<2x16x16xf32>
    %335 = arith.mulf %334, %333 : vector<2x16x16xf32>
    %336 = arith.addf %331, %335 : vector<2x16x16xf32>
    %c59 = arith.constant 59 : index
    %337 = memref.load %arg2[%c59] : memref<98xf32, #tpu.memory_space<smem>>
    %338 = vector.extract_strided_slice %321 {offsets = [0, 0, 3], sizes = [2, 16, 16], strides = [1, 1, 1]} : vector<2x16x22xf32> to vector<2x16x16xf32>
    %339 = vector.broadcast %337 : f32 to vector<2x16x16xf32>
    %340 = arith.mulf %339, %338 : vector<2x16x16xf32>
    %341 = arith.addf %336, %340 : vector<2x16x16xf32>
    %c60 = arith.constant 60 : index
    %342 = memref.load %arg2[%c60] : memref<98xf32, #tpu.memory_space<smem>>
    %343 = vector.extract_strided_slice %321 {offsets = [0, 0, 4], sizes = [2, 16, 16], strides = [1, 1, 1]} : vector<2x16x22xf32> to vector<2x16x16xf32>
    %344 = vector.broadcast %342 : f32 to vector<2x16x16xf32>
    %345 = arith.mulf %344, %343 : vector<2x16x16xf32>
    %346 = arith.addf %341, %345 : vector<2x16x16xf32>
    %c61 = arith.constant 61 : index
    %347 = memref.load %arg2[%c61] : memref<98xf32, #tpu.memory_space<smem>>
    %348 = vector.extract_strided_slice %321 {offsets = [0, 0, 5], sizes = [2, 16, 16], strides = [1, 1, 1]} : vector<2x16x22xf32> to vector<2x16x16xf32>
    %349 = vector.broadcast %347 : f32 to vector<2x16x16xf32>
    %350 = arith.mulf %349, %348 : vector<2x16x16xf32>
    %351 = arith.addf %346, %350 : vector<2x16x16xf32>
    %c62 = arith.constant 62 : index
    %352 = memref.load %arg2[%c62] : memref<98xf32, #tpu.memory_space<smem>>
    %353 = vector.extract_strided_slice %321 {offsets = [0, 0, 6], sizes = [2, 16, 16], strides = [1, 1, 1]} : vector<2x16x22xf32> to vector<2x16x16xf32>
    %354 = vector.broadcast %352 : f32 to vector<2x16x16xf32>
    %355 = arith.mulf %354, %353 : vector<2x16x16xf32>
    %356 = arith.addf %351, %355 : vector<2x16x16xf32>
    %c1_76 = arith.constant 1 : index
    %c0_77 = arith.constant 0 : index
    %c2_78 = arith.constant 2 : index
    %c0_79 = arith.constant 0 : index
    %357 = vector.load %arg5[%c1_76, %c0_77, %c2_78, %c0_79] : memref<2x2x22x22xf32, #tpu.memory_space<vmem>>, vector<1x2x16x22xf32>
    %358 = vector.shape_cast %357 : vector<1x2x16x22xf32> to vector<2x16x22xf32>
    %c63 = arith.constant 63 : index
    %359 = memref.load %arg2[%c63] : memref<98xf32, #tpu.memory_space<smem>>
    %360 = vector.extract_strided_slice %358 {offsets = [0, 0, 0], sizes = [2, 16, 16], strides = [1, 1, 1]} : vector<2x16x22xf32> to vector<2x16x16xf32>
    %361 = vector.broadcast %359 : f32 to vector<2x16x16xf32>
    %362 = arith.mulf %361, %360 : vector<2x16x16xf32>
    %363 = arith.addf %356, %362 : vector<2x16x16xf32>
    %c64 = arith.constant 64 : index
    %364 = memref.load %arg2[%c64] : memref<98xf32, #tpu.memory_space<smem>>
    %365 = vector.extract_strided_slice %358 {offsets = [0, 0, 1], sizes = [2, 16, 16], strides = [1, 1, 1]} : vector<2x16x22xf32> to vector<2x16x16xf32>
    %366 = vector.broadcast %364 : f32 to vector<2x16x16xf32>
    %367 = arith.mulf %366, %365 : vector<2x16x16xf32>
    %368 = arith.addf %363, %367 : vector<2x16x16xf32>
    %c65 = arith.constant 65 : index
    %369 = memref.load %arg2[%c65] : memref<98xf32, #tpu.memory_space<smem>>
    %370 = vector.extract_strided_slice %358 {offsets = [0, 0, 2], sizes = [2, 16, 16], strides = [1, 1, 1]} : vector<2x16x22xf32> to vector<2x16x16xf32>
    %371 = vector.broadcast %369 : f32 to vector<2x16x16xf32>
    %372 = arith.mulf %371, %370 : vector<2x16x16xf32>
    %373 = arith.addf %368, %372 : vector<2x16x16xf32>
    %c66 = arith.constant 66 : index
    %374 = memref.load %arg2[%c66] : memref<98xf32, #tpu.memory_space<smem>>
    %375 = vector.extract_strided_slice %358 {offsets = [0, 0, 3], sizes = [2, 16, 16], strides = [1, 1, 1]} : vector<2x16x22xf32> to vector<2x16x16xf32>
    %376 = vector.broadcast %374 : f32 to vector<2x16x16xf32>
    %377 = arith.mulf %376, %375 : vector<2x16x16xf32>
    %378 = arith.addf %373, %377 : vector<2x16x16xf32>
    %c67 = arith.constant 67 : index
    %379 = memref.load %arg2[%c67] : memref<98xf32, #tpu.memory_space<smem>>
    %380 = vector.extract_strided_slice %358 {offsets = [0, 0, 4], sizes = [2, 16, 16], strides = [1, 1, 1]} : vector<2x16x22xf32> to vector<2x16x16xf32>
    %381 = vector.broadcast %379 : f32 to vector<2x16x16xf32>
    %382 = arith.mulf %381, %380 : vector<2x16x16xf32>
    %383 = arith.addf %378, %382 : vector<2x16x16xf32>
    %c68 = arith.constant 68 : index
    %384 = memref.load %arg2[%c68] : memref<98xf32, #tpu.memory_space<smem>>
    %385 = vector.extract_strided_slice %358 {offsets = [0, 0, 5], sizes = [2, 16, 16], strides = [1, 1, 1]} : vector<2x16x22xf32> to vector<2x16x16xf32>
    %386 = vector.broadcast %384 : f32 to vector<2x16x16xf32>
    %387 = arith.mulf %386, %385 : vector<2x16x16xf32>
    %388 = arith.addf %383, %387 : vector<2x16x16xf32>
    %c69 = arith.constant 69 : index
    %389 = memref.load %arg2[%c69] : memref<98xf32, #tpu.memory_space<smem>>
    %390 = vector.extract_strided_slice %358 {offsets = [0, 0, 6], sizes = [2, 16, 16], strides = [1, 1, 1]} : vector<2x16x22xf32> to vector<2x16x16xf32>
    %391 = vector.broadcast %389 : f32 to vector<2x16x16xf32>
    %392 = arith.mulf %391, %390 : vector<2x16x16xf32>
    %393 = arith.addf %388, %392 : vector<2x16x16xf32>
    %c1_80 = arith.constant 1 : index
    %c0_81 = arith.constant 0 : index
    %c3_82 = arith.constant 3 : index
    %c0_83 = arith.constant 0 : index
    %394 = vector.load %arg5[%c1_80, %c0_81, %c3_82, %c0_83] : memref<2x2x22x22xf32, #tpu.memory_space<vmem>>, vector<1x2x16x22xf32>
    %395 = vector.shape_cast %394 : vector<1x2x16x22xf32> to vector<2x16x22xf32>
    %c70 = arith.constant 70 : index
    %396 = memref.load %arg2[%c70] : memref<98xf32, #tpu.memory_space<smem>>
    %397 = vector.extract_strided_slice %395 {offsets = [0, 0, 0], sizes = [2, 16, 16], strides = [1, 1, 1]} : vector<2x16x22xf32> to vector<2x16x16xf32>
    %398 = vector.broadcast %396 : f32 to vector<2x16x16xf32>
    %399 = arith.mulf %398, %397 : vector<2x16x16xf32>
    %400 = arith.addf %393, %399 : vector<2x16x16xf32>
    %c71 = arith.constant 71 : index
    %401 = memref.load %arg2[%c71] : memref<98xf32, #tpu.memory_space<smem>>
    %402 = vector.extract_strided_slice %395 {offsets = [0, 0, 1], sizes = [2, 16, 16], strides = [1, 1, 1]} : vector<2x16x22xf32> to vector<2x16x16xf32>
    %403 = vector.broadcast %401 : f32 to vector<2x16x16xf32>
    %404 = arith.mulf %403, %402 : vector<2x16x16xf32>
    %405 = arith.addf %400, %404 : vector<2x16x16xf32>
    %c72 = arith.constant 72 : index
    %406 = memref.load %arg2[%c72] : memref<98xf32, #tpu.memory_space<smem>>
    %407 = vector.extract_strided_slice %395 {offsets = [0, 0, 2], sizes = [2, 16, 16], strides = [1, 1, 1]} : vector<2x16x22xf32> to vector<2x16x16xf32>
    %408 = vector.broadcast %406 : f32 to vector<2x16x16xf32>
    %409 = arith.mulf %408, %407 : vector<2x16x16xf32>
    %410 = arith.addf %405, %409 : vector<2x16x16xf32>
    %c73 = arith.constant 73 : index
    %411 = memref.load %arg2[%c73] : memref<98xf32, #tpu.memory_space<smem>>
    %412 = vector.extract_strided_slice %395 {offsets = [0, 0, 3], sizes = [2, 16, 16], strides = [1, 1, 1]} : vector<2x16x22xf32> to vector<2x16x16xf32>
    %413 = vector.broadcast %411 : f32 to vector<2x16x16xf32>
    %414 = arith.mulf %413, %412 : vector<2x16x16xf32>
    %415 = arith.addf %410, %414 : vector<2x16x16xf32>
    %c74 = arith.constant 74 : index
    %416 = memref.load %arg2[%c74] : memref<98xf32, #tpu.memory_space<smem>>
    %417 = vector.extract_strided_slice %395 {offsets = [0, 0, 4], sizes = [2, 16, 16], strides = [1, 1, 1]} : vector<2x16x22xf32> to vector<2x16x16xf32>
    %418 = vector.broadcast %416 : f32 to vector<2x16x16xf32>
    %419 = arith.mulf %418, %417 : vector<2x16x16xf32>
    %420 = arith.addf %415, %419 : vector<2x16x16xf32>
    %c75 = arith.constant 75 : index
    %421 = memref.load %arg2[%c75] : memref<98xf32, #tpu.memory_space<smem>>
    %422 = vector.extract_strided_slice %395 {offsets = [0, 0, 5], sizes = [2, 16, 16], strides = [1, 1, 1]} : vector<2x16x22xf32> to vector<2x16x16xf32>
    %423 = vector.broadcast %421 : f32 to vector<2x16x16xf32>
    %424 = arith.mulf %423, %422 : vector<2x16x16xf32>
    %425 = arith.addf %420, %424 : vector<2x16x16xf32>
    %c76 = arith.constant 76 : index
    %426 = memref.load %arg2[%c76] : memref<98xf32, #tpu.memory_space<smem>>
    %427 = vector.extract_strided_slice %395 {offsets = [0, 0, 6], sizes = [2, 16, 16], strides = [1, 1, 1]} : vector<2x16x22xf32> to vector<2x16x16xf32>
    %428 = vector.broadcast %426 : f32 to vector<2x16x16xf32>
    %429 = arith.mulf %428, %427 : vector<2x16x16xf32>
    %430 = arith.addf %425, %429 : vector<2x16x16xf32>
    %c1_84 = arith.constant 1 : index
    %c0_85 = arith.constant 0 : index
    %c4_86 = arith.constant 4 : index
    %c0_87 = arith.constant 0 : index
    %431 = vector.load %arg5[%c1_84, %c0_85, %c4_86, %c0_87] : memref<2x2x22x22xf32, #tpu.memory_space<vmem>>, vector<1x2x16x22xf32>
    %432 = vector.shape_cast %431 : vector<1x2x16x22xf32> to vector<2x16x22xf32>
    %c77 = arith.constant 77 : index
    %433 = memref.load %arg2[%c77] : memref<98xf32, #tpu.memory_space<smem>>
    %434 = vector.extract_strided_slice %432 {offsets = [0, 0, 0], sizes = [2, 16, 16], strides = [1, 1, 1]} : vector<2x16x22xf32> to vector<2x16x16xf32>
    %435 = vector.broadcast %433 : f32 to vector<2x16x16xf32>
    %436 = arith.mulf %435, %434 : vector<2x16x16xf32>
    %437 = arith.addf %430, %436 : vector<2x16x16xf32>
    %c78 = arith.constant 78 : index
    %438 = memref.load %arg2[%c78] : memref<98xf32, #tpu.memory_space<smem>>
    %439 = vector.extract_strided_slice %432 {offsets = [0, 0, 1], sizes = [2, 16, 16], strides = [1, 1, 1]} : vector<2x16x22xf32> to vector<2x16x16xf32>
    %440 = vector.broadcast %438 : f32 to vector<2x16x16xf32>
    %441 = arith.mulf %440, %439 : vector<2x16x16xf32>
    %442 = arith.addf %437, %441 : vector<2x16x16xf32>
    %c79 = arith.constant 79 : index
    %443 = memref.load %arg2[%c79] : memref<98xf32, #tpu.memory_space<smem>>
    %444 = vector.extract_strided_slice %432 {offsets = [0, 0, 2], sizes = [2, 16, 16], strides = [1, 1, 1]} : vector<2x16x22xf32> to vector<2x16x16xf32>
    %445 = vector.broadcast %443 : f32 to vector<2x16x16xf32>
    %446 = arith.mulf %445, %444 : vector<2x16x16xf32>
    %447 = arith.addf %442, %446 : vector<2x16x16xf32>
    %c80 = arith.constant 80 : index
    %448 = memref.load %arg2[%c80] : memref<98xf32, #tpu.memory_space<smem>>
    %449 = vector.extract_strided_slice %432 {offsets = [0, 0, 3], sizes = [2, 16, 16], strides = [1, 1, 1]} : vector<2x16x22xf32> to vector<2x16x16xf32>
    %450 = vector.broadcast %448 : f32 to vector<2x16x16xf32>
    %451 = arith.mulf %450, %449 : vector<2x16x16xf32>
    %452 = arith.addf %447, %451 : vector<2x16x16xf32>
    %c81 = arith.constant 81 : index
    %453 = memref.load %arg2[%c81] : memref<98xf32, #tpu.memory_space<smem>>
    %454 = vector.extract_strided_slice %432 {offsets = [0, 0, 4], sizes = [2, 16, 16], strides = [1, 1, 1]} : vector<2x16x22xf32> to vector<2x16x16xf32>
    %455 = vector.broadcast %453 : f32 to vector<2x16x16xf32>
    %456 = arith.mulf %455, %454 : vector<2x16x16xf32>
    %457 = arith.addf %452, %456 : vector<2x16x16xf32>
    %c82 = arith.constant 82 : index
    %458 = memref.load %arg2[%c82] : memref<98xf32, #tpu.memory_space<smem>>
    %459 = vector.extract_strided_slice %432 {offsets = [0, 0, 5], sizes = [2, 16, 16], strides = [1, 1, 1]} : vector<2x16x22xf32> to vector<2x16x16xf32>
    %460 = vector.broadcast %458 : f32 to vector<2x16x16xf32>
    %461 = arith.mulf %460, %459 : vector<2x16x16xf32>
    %462 = arith.addf %457, %461 : vector<2x16x16xf32>
    %c83 = arith.constant 83 : index
    %463 = memref.load %arg2[%c83] : memref<98xf32, #tpu.memory_space<smem>>
    %464 = vector.extract_strided_slice %432 {offsets = [0, 0, 6], sizes = [2, 16, 16], strides = [1, 1, 1]} : vector<2x16x22xf32> to vector<2x16x16xf32>
    %465 = vector.broadcast %463 : f32 to vector<2x16x16xf32>
    %466 = arith.mulf %465, %464 : vector<2x16x16xf32>
    %467 = arith.addf %462, %466 : vector<2x16x16xf32>
    %c1_88 = arith.constant 1 : index
    %c0_89 = arith.constant 0 : index
    %c5_90 = arith.constant 5 : index
    %c0_91 = arith.constant 0 : index
    %468 = vector.load %arg5[%c1_88, %c0_89, %c5_90, %c0_91] : memref<2x2x22x22xf32, #tpu.memory_space<vmem>>, vector<1x2x16x22xf32>
    %469 = vector.shape_cast %468 : vector<1x2x16x22xf32> to vector<2x16x22xf32>
    %c84 = arith.constant 84 : index
    %470 = memref.load %arg2[%c84] : memref<98xf32, #tpu.memory_space<smem>>
    %471 = vector.extract_strided_slice %469 {offsets = [0, 0, 0], sizes = [2, 16, 16], strides = [1, 1, 1]} : vector<2x16x22xf32> to vector<2x16x16xf32>
    %472 = vector.broadcast %470 : f32 to vector<2x16x16xf32>
    %473 = arith.mulf %472, %471 : vector<2x16x16xf32>
    %474 = arith.addf %467, %473 : vector<2x16x16xf32>
    %c85 = arith.constant 85 : index
    %475 = memref.load %arg2[%c85] : memref<98xf32, #tpu.memory_space<smem>>
    %476 = vector.extract_strided_slice %469 {offsets = [0, 0, 1], sizes = [2, 16, 16], strides = [1, 1, 1]} : vector<2x16x22xf32> to vector<2x16x16xf32>
    %477 = vector.broadcast %475 : f32 to vector<2x16x16xf32>
    %478 = arith.mulf %477, %476 : vector<2x16x16xf32>
    %479 = arith.addf %474, %478 : vector<2x16x16xf32>
    %c86 = arith.constant 86 : index
    %480 = memref.load %arg2[%c86] : memref<98xf32, #tpu.memory_space<smem>>
    %481 = vector.extract_strided_slice %469 {offsets = [0, 0, 2], sizes = [2, 16, 16], strides = [1, 1, 1]} : vector<2x16x22xf32> to vector<2x16x16xf32>
    %482 = vector.broadcast %480 : f32 to vector<2x16x16xf32>
    %483 = arith.mulf %482, %481 : vector<2x16x16xf32>
    %484 = arith.addf %479, %483 : vector<2x16x16xf32>
    %c87 = arith.constant 87 : index
    %485 = memref.load %arg2[%c87] : memref<98xf32, #tpu.memory_space<smem>>
    %486 = vector.extract_strided_slice %469 {offsets = [0, 0, 3], sizes = [2, 16, 16], strides = [1, 1, 1]} : vector<2x16x22xf32> to vector<2x16x16xf32>
    %487 = vector.broadcast %485 : f32 to vector<2x16x16xf32>
    %488 = arith.mulf %487, %486 : vector<2x16x16xf32>
    %489 = arith.addf %484, %488 : vector<2x16x16xf32>
    %c88 = arith.constant 88 : index
    %490 = memref.load %arg2[%c88] : memref<98xf32, #tpu.memory_space<smem>>
    %491 = vector.extract_strided_slice %469 {offsets = [0, 0, 4], sizes = [2, 16, 16], strides = [1, 1, 1]} : vector<2x16x22xf32> to vector<2x16x16xf32>
    %492 = vector.broadcast %490 : f32 to vector<2x16x16xf32>
    %493 = arith.mulf %492, %491 : vector<2x16x16xf32>
    %494 = arith.addf %489, %493 : vector<2x16x16xf32>
    %c89 = arith.constant 89 : index
    %495 = memref.load %arg2[%c89] : memref<98xf32, #tpu.memory_space<smem>>
    %496 = vector.extract_strided_slice %469 {offsets = [0, 0, 5], sizes = [2, 16, 16], strides = [1, 1, 1]} : vector<2x16x22xf32> to vector<2x16x16xf32>
    %497 = vector.broadcast %495 : f32 to vector<2x16x16xf32>
    %498 = arith.mulf %497, %496 : vector<2x16x16xf32>
    %499 = arith.addf %494, %498 : vector<2x16x16xf32>
    %c90 = arith.constant 90 : index
    %500 = memref.load %arg2[%c90] : memref<98xf32, #tpu.memory_space<smem>>
    %501 = vector.extract_strided_slice %469 {offsets = [0, 0, 6], sizes = [2, 16, 16], strides = [1, 1, 1]} : vector<2x16x22xf32> to vector<2x16x16xf32>
    %502 = vector.broadcast %500 : f32 to vector<2x16x16xf32>
    %503 = arith.mulf %502, %501 : vector<2x16x16xf32>
    %504 = arith.addf %499, %503 : vector<2x16x16xf32>
    %c1_92 = arith.constant 1 : index
    %c0_93 = arith.constant 0 : index
    %c6_94 = arith.constant 6 : index
    %c0_95 = arith.constant 0 : index
    %505 = vector.load %arg5[%c1_92, %c0_93, %c6_94, %c0_95] : memref<2x2x22x22xf32, #tpu.memory_space<vmem>>, vector<1x2x16x22xf32>
    %506 = vector.shape_cast %505 : vector<1x2x16x22xf32> to vector<2x16x22xf32>
    %c91 = arith.constant 91 : index
    %507 = memref.load %arg2[%c91] : memref<98xf32, #tpu.memory_space<smem>>
    %508 = vector.extract_strided_slice %506 {offsets = [0, 0, 0], sizes = [2, 16, 16], strides = [1, 1, 1]} : vector<2x16x22xf32> to vector<2x16x16xf32>
    %509 = vector.broadcast %507 : f32 to vector<2x16x16xf32>
    %510 = arith.mulf %509, %508 : vector<2x16x16xf32>
    %511 = arith.addf %504, %510 : vector<2x16x16xf32>
    %c92 = arith.constant 92 : index
    %512 = memref.load %arg2[%c92] : memref<98xf32, #tpu.memory_space<smem>>
    %513 = vector.extract_strided_slice %506 {offsets = [0, 0, 1], sizes = [2, 16, 16], strides = [1, 1, 1]} : vector<2x16x22xf32> to vector<2x16x16xf32>
    %514 = vector.broadcast %512 : f32 to vector<2x16x16xf32>
    %515 = arith.mulf %514, %513 : vector<2x16x16xf32>
    %516 = arith.addf %511, %515 : vector<2x16x16xf32>
    %c93 = arith.constant 93 : index
    %517 = memref.load %arg2[%c93] : memref<98xf32, #tpu.memory_space<smem>>
    %518 = vector.extract_strided_slice %506 {offsets = [0, 0, 2], sizes = [2, 16, 16], strides = [1, 1, 1]} : vector<2x16x22xf32> to vector<2x16x16xf32>
    %519 = vector.broadcast %517 : f32 to vector<2x16x16xf32>
    %520 = arith.mulf %519, %518 : vector<2x16x16xf32>
    %521 = arith.addf %516, %520 : vector<2x16x16xf32>
    %c94 = arith.constant 94 : index
    %522 = memref.load %arg2[%c94] : memref<98xf32, #tpu.memory_space<smem>>
    %523 = vector.extract_strided_slice %506 {offsets = [0, 0, 3], sizes = [2, 16, 16], strides = [1, 1, 1]} : vector<2x16x22xf32> to vector<2x16x16xf32>
    %524 = vector.broadcast %522 : f32 to vector<2x16x16xf32>
    %525 = arith.mulf %524, %523 : vector<2x16x16xf32>
    %526 = arith.addf %521, %525 : vector<2x16x16xf32>
    %c95 = arith.constant 95 : index
    %527 = memref.load %arg2[%c95] : memref<98xf32, #tpu.memory_space<smem>>
    %528 = vector.extract_strided_slice %506 {offsets = [0, 0, 4], sizes = [2, 16, 16], strides = [1, 1, 1]} : vector<2x16x22xf32> to vector<2x16x16xf32>
    %529 = vector.broadcast %527 : f32 to vector<2x16x16xf32>
    %530 = arith.mulf %529, %528 : vector<2x16x16xf32>
    %531 = arith.addf %526, %530 : vector<2x16x16xf32>
    %c96 = arith.constant 96 : index
    %532 = memref.load %arg2[%c96] : memref<98xf32, #tpu.memory_space<smem>>
    %533 = vector.extract_strided_slice %506 {offsets = [0, 0, 5], sizes = [2, 16, 16], strides = [1, 1, 1]} : vector<2x16x22xf32> to vector<2x16x16xf32>
    %534 = vector.broadcast %532 : f32 to vector<2x16x16xf32>
    %535 = arith.mulf %534, %533 : vector<2x16x16xf32>
    %536 = arith.addf %531, %535 : vector<2x16x16xf32>
    %c97 = arith.constant 97 : index
    %537 = memref.load %arg2[%c97] : memref<98xf32, #tpu.memory_space<smem>>
    %538 = vector.extract_strided_slice %506 {offsets = [0, 0, 6], sizes = [2, 16, 16], strides = [1, 1, 1]} : vector<2x16x22xf32> to vector<2x16x16xf32>
    %539 = vector.broadcast %537 : f32 to vector<2x16x16xf32>
    %540 = arith.mulf %539, %538 : vector<2x16x16xf32>
    %541 = arith.addf %536, %540 : vector<2x16x16xf32>
    %cst_96 = arith.constant 0.000000e+00 : f32
    %542 = vector.broadcast %cst_96 : f32 to vector<2x16x16xf32>
    %543 = arith.subf %542, %541 : vector<2x16x16xf32>
    %544 = math.exp %543 : vector<2x16x16xf32>
    %cst_97 = arith.constant 1.000000e+00 : f32
    %545 = vector.broadcast %cst_97 : f32 to vector<2x16x16xf32>
    %546 = arith.addf %545, %544 : vector<2x16x16xf32>
    %547 = tpu.reciprocal %546 : vector<2x16x16xf32> -> vector<2x16x16xf32>
    %548 = vector.shape_cast %547 : vector<2x16x16xf32> to vector<2x1x16x16xf32>
    %c0_98 = arith.constant 0 : index
    %c0_99 = arith.constant 0 : index
    %c0_100 = arith.constant 0 : index
    %c0_101 = arith.constant 0 : index
    %549 = vector.load %arg1[%c0_98, %c0_99, %c0_100, %c0_101] : memref<2x4x16x16xf32, #tpu.memory_space<vmem>>, vector<2x4x16x16xf32>
    %550 = vector.broadcast %548 : vector<2x1x16x16xf32> to vector<2x4x16x16xf32>
    %551 = arith.mulf %550, %549 : vector<2x4x16x16xf32>
    %c0_102 = arith.constant 0 : index
    %c0_103 = arith.constant 0 : index
    %c0_104 = arith.constant 0 : index
    %c0_105 = arith.constant 0 : index
    %552 = vector.load %arg4[%c0_102, %c0_103, %c0_104, %c0_105] : memref<2x4x16x16xf32, #tpu.memory_space<vmem>>, vector<2x4x16x16xf32>
    tpu.vector_store %arg4[%c0_102, %c0_103, %c0_104, %c0_105], %551 {strides = array<i32>} : memref<2x4x16x16xf32, #tpu.memory_space<vmem>>, vector<2x4x16x16xf32>,
    return
  }
  func.func @transform_0(%arg0: i32) -> (i32, i32, i32, i32) {
    %c0_i32 = arith.constant 0 : i32
    %c0_i32_0 = arith.constant 0 : i32
    %c0_i32_1 = arith.constant 0 : i32
    %c0_i32_2 = arith.constant 0 : i32
    return %arg0, %c0_i32, %c0_i32_0, %c0_i32_1 : i32, i32, i32, i32
  }
  func.func @transform_1(%arg0: i32) -> i32 {
    %c0_i32 = arith.constant 0 : i32
    %c0_i32_0 = arith.constant 0 : i32
    return %c0_i32 : i32
  }
  func.func @transform_2(%arg0: i32) -> i32 {
    %c0_i32 = arith.constant 0 : i32
    %c0_i32_0 = arith.constant 0 : i32
    return %c0_i32 : i32
  }
  func.func @transform_3(%arg0: i32) -> (i32, i32, i32, i32) {
    %c0_i32 = arith.constant 0 : i32
    %c0_i32_0 = arith.constant 0 : i32
    %c0_i32_1 = arith.constant 0 : i32
    %c0_i32_2 = arith.constant 0 : i32
    return %arg0, %c0_i32, %c0_i32_0, %c0_i32_1 : i32, i32, i32, i32
  }
}

</mosaic_0001>

<llo_original>
// kernel: tpu_custom_call.1
$region0: #{tpu_custom_call.1}
  #allocation0 [shape = 'u32[]', space=smem, size = 0x4, offset = 0x4, fixed_abs, tag = 'smem constant byte address 0x4 - core index']
  #allocation1 [shape = 'u32[144,128]{1,0:T(1,128)}', space=vmem, size = 0x12000, scoped, tag = 'internal scratch']
  #allocation2 [shape = 'f32[2,2,22,22]{3,2,1,0:T(8,128)}', space=vmem, size = 0xc000, scoped, tag = 'scratch operand']
  #allocation3 [shape = 'f32[1]{0:T(128)S(6)}', space=smem, size = 0x200, scoped, tag = 'scoped memory for tpu_custom_call.1']
  %s0 = inlined_call_operand.hbm [shape: f32[2,4,16,16], index: 0, kind: input, shape index: {}]
  %s1 = inlined_call_operand.vmem [shape: f32[98], index: 1, kind: input, shape index: {}]
  %s2 = inlined_call_operand.<no memory space> [shape: f32[1], index: 2, kind: input, shape index: {}]
  %s3 = inlined_call_operand.hbm [shape: f32[2,4,16,16], index: 3, kind: output, shape index: {}]
  %s4 = sld [smem:[#allocation0]]
  $region30: #{tpu_custom_call.1} parent=0
    _
  %s6 = ssub.s32 1, %s4
  %s7 = scalar_select 0, %s6, %s4
  %8 = sst [smem:[#allocation3]] %s2
  $region1: #{tpu_custom_call.1} parent=0
    #allocation4 [shape = 'u8[65536]{0}', space=vmem, size = 0x10000, scoped, tag = 'input window, operand 0, single buffered']
    #allocation5 [shape = 's32[1]{0}', space=sflag, size = 0x4, scoped, tag = 'scoped memory for tpu_custom_call.1']
    #allocation6 [shape = 's32[1]{0}', space=sflag, size = 0x4, scoped, tag = 'scoped memory for tpu_custom_call.1']
    #allocation7 [shape = 's32[1]{0}', space=sflag, size = 0x4, scoped, tag = 'scoped memory for tpu_custom_call.1']
    #allocation8 [shape = 'u8[512]{0}', space=smem, size = 0x200, scoped, tag = 'input window, operand 1, single buffered']
    #allocation9 [shape = 'u8[65536]{0}', space=vmem, size = 0x10000, scoped, tag = 'output window, operand 0, single buffered']
    %9 = vsyncpa [#allocation5], 0
    %10 = vsyncpa [#allocation7], 0
    %11 = vsyncpa [#allocation6], 0
    // Predicated region
    $region2: #{tpu_custom_call.1} parent=1 // pred_check
      _
    $region3: #{tpu_custom_call.1} parent=1 // pred_check_branch
      %13 = sbr.rel (0) target = $region5
    $region4: #{tpu_custom_call.1} parent=1 // pred_region
      %s15 = ssub.s32 2048, 2048
      %16 = vsyncadd [#allocation5], %s15
      %s17 = sshll.u32 [#allocation4], 4
      %s18 = int_to_ptr.vmem [resolvable:$true] %s17
      %23 = dma.hbm_to_vmem [thread:$0]  %s0, 2048, %s18, [#allocation5], 128, 128, 8
    $region5: #{tpu_custom_call.1} parent=1 // pred_fallthru
      _
    // Predicated region
    $region6: #{tpu_custom_call.1} parent=1 // pred_check
      _
    $region7: #{tpu_custom_call.1} parent=1 // pred_check_branch
      %25 = sbr.rel (0) target = $region9
    $region8: #{tpu_custom_call.1} parent=1 // pred_region
      %s27 = ssub.s32 16, 16
      %28 = vsyncadd [#allocation7], %s27
      %s30 = sshll.u32 %s1, 4
      %s31 = int_to_ptr.vmem [resolvable:$true] %s30
      %33 = dma.vmem_to_smem %s31, 16, [#allocation8], [#allocation7]
    $region9: #{tpu_custom_call.1} parent=1 // pred_fallthru
      _
    // Predicated region
    $region10: #{tpu_custom_call.1} parent=1 // pred_check
      _
    $region11: #{tpu_custom_call.1} parent=1 // pred_check_branch
      %35 = sbr.rel (0) target = $region13
    $region12: #{tpu_custom_call.1} parent=1 // pred_region
      _
    $region13: #{tpu_custom_call.1} parent=1 // pred_fallthru
      _
    // Predicated region
    $region14: #{tpu_custom_call.1} parent=1 // pred_check
      _
    $region15: #{tpu_custom_call.1} parent=1 // pred_check_branch
      %37 = sbr.rel (0) target = $region17
    $region16: #{tpu_custom_call.1} parent=1 // pred_region
      %38 = dma.done [#allocation5], 2048
    $region17: #{tpu_custom_call.1} parent=1 // pred_fallthru
      _
    // Predicated region
    $region18: #{tpu_custom_call.1} parent=1 // pred_check
      _
    $region19: #{tpu_custom_call.1} parent=1 // pred_check_branch
      %40 = sbr.rel (0) target = $region21
    $region20: #{tpu_custom_call.1} parent=1 // pred_region
      %41 = dma.done [#allocation7], 16
    $region21: #{tpu_custom_call.1} parent=1 // pred_fallthru
      _
    %42 = sfence
    %v43 = vld [vmem:[#allocation4] sm:$0xff]
    %v44 = vld [vmem:[#allocation4 + $0x8] sm:$0xff]
    %v45 = vld [vmem:[#allocation4 + $0x10] sm:$0xff]
    %v46 = vld [vmem:[#allocation4 + $0x18] sm:$0xff]
    %v47 = vld [vmem:[#allocation4 + $0x20] sm:$0xff]
    %v48 = vld [vmem:[#allocation4 + $0x28] sm:$0xff]
    %v49 = vld [vmem:[#allocation4 + $0x30] sm:$0xff]
    %v50 = vld [vmem:[#allocation4 + $0x38] sm:$0xff]
    %v51 = vld [vmem:[#allocation4 + $0x40] sm:$0xff]
    %v52 = vld [vmem:[#allocation4 + $0x48] sm:$0xff]
    %v53 = vld [vmem:[#allocation4 + $0x50] sm:$0xff]
    %v54 = vld [vmem:[#allocation4 + $0x58] sm:$0xff]
    %v55 = vld [vmem:[#allocation4 + $0x60] sm:$0xff]
    %v56 = vld [vmem:[#allocation4 + $0x68] sm:$0xff]
    %v57 = vld [vmem:[#allocation4 + $0x70] sm:$0xff]
    %v58 = vld [vmem:[#allocation4 + $0x78] sm:$0xff]
    %vm59 = vcmask 130048
    %v60 = vsel %vm59, %v43, 0.0
    %v61 = vsel %vm59, %v45, 0.0
    %v62 = vadd.f32 %v60, %v61
    %v63 = vsel %vm59, %v47, 0.0
    %v64 = vadd.f32 %v62, %v63
    %v65 = vsel %vm59, %v49, 0.0
    %v66 = vadd.f32 %v64, %v65
    %v67 = vsel %vm59, %v44, 0.0
    %v68 = vsel %vm59, %v46, 0.0
    %v69 = vadd.f32 %v67, %v68
    %v70 = vsel %vm59, %v48, 0.0
    %v71 = vadd.f32 %v69, %v70
    %v72 = vsel %vm59, %v50, 0.0
    %v73 = vadd.f32 %v71, %v72
    %v74 = vsel %vm59, %v51, 0.0
    %v75 = vsel %vm59, %v53, 0.0
    %v76 = vadd.f32 %v74, %v75
    %v77 = vsel %vm59, %v55, 0.0
    %v78 = vadd.f32 %v76, %v77
    %v79 = vsel %vm59, %v57, 0.0
    %v80 = vadd.f32 %v78, %v79
    %v81 = vsel %vm59, %v52, 0.0
    %v82 = vsel %vm59, %v54, 0.0
    %v83 = vadd.f32 %v81, %v82
    %v84 = vsel %vm59, %v56, 0.0
    %v85 = vadd.f32 %v83, %v84
    %v86 = vsel %vm59, %v58, 0.0
    %v87 = vadd.f32 %v85, %v86
    %v88 = vrcp.pop 4.0
    %v89 = vmul.f32 %v66, %v88
    %v90 = vmul.f32 %v73, %v88
    %v91 = vmul.f32 %v80, %v88
    %v92 = vmul.f32 %v87, %v88
    %v93 = vsel %vm59, %v43, -inf
    %v94 = vsel %vm59, %v45, -inf
    %v95 = vmax.f32 %v93, %v94
    %v96 = vsel %vm59, %v47, -inf
    %v97 = vmax.f32 %v95, %v96
    %v98 = vsel %vm59, %v49, -inf
    %v99 = vmax.f32 %v97, %v98
    %v100 = vsel %vm59, %v44, -inf
    %v101 = vsel %vm59, %v46, -inf
    %v102 = vmax.f32 %v100, %v101
    %v103 = vsel %vm59, %v48, -inf
    %v104 = vmax.f32 %v102, %v103
    %v105 = vsel %vm59, %v50, -inf
    %v106 = vmax.f32 %v104, %v105
    %v107 = vsel %vm59, %v51, -inf
    %v108 = vsel %vm59, %v53, -inf
    %v109 = vmax.f32 %v107, %v108
    %v110 = vsel %vm59, %v55, -inf
    %v111 = vmax.f32 %v109, %v110
    %v112 = vsel %vm59, %v57, -inf
    %v113 = vmax.f32 %v111, %v112
    %v114 = vsel %vm59, %v52, -inf
    %v115 = vsel %vm59, %v54, -inf
    %v116 = vmax.f32 %v114, %v115
    %v117 = vsel %vm59, %v56, -inf
    %v118 = vmax.f32 %v116, %v117
    %v119 = vsel %vm59, %v58, -inf
    %v120 = vmax.f32 %v118, %v119
    %vm121 = vcmask 174080
    %122 = vst.msk [vmem:[#allocation2] sm:$0x7] %vm121, 0.0
    %123 = vst.msk [vmem:[#allocation2 + $0x18] sm:$0x7] %vm121, 0.0
    %124 = vst.msk [vmem:[#allocation2 + $0x30] sm:$0x7] %vm121, 0.0
    %125 = vst.msk [vmem:[#allocation2 + $0x48] sm:$0x7] %vm121, 0.0
    %126 = vst.msk [vmem:[#allocation2 + $0x13] sm:$0x7] %vm121, 0.0
    %127 = vst.msk [vmem:[#allocation2 + $0x2b] sm:$0x7] %vm121, 0.0
    %128 = vst.msk [vmem:[#allocation2 + $0x43] sm:$0x7] %vm121, 0.0
    %129 = vst.msk [vmem:[#allocation2 + $0x5b] sm:$0x7] %vm121, 0.0
    %vm130 = vcmask 23552
    %131 = vst.msk [vmem:[#allocation2] sm:$0xff] %vm130, 0.0
    %132 = vst.msk [vmem:[#allocation2 + $0x8] sm:$0xff] %vm130, 0.0
    %vm133 = vcmask 21504
    %134 = vst.msk [vmem:[#allocation2 + $0x10] sm:$0x3f] %vm133, 0.0
    %135 = vst.msk [vmem:[#allocation2 + $0x18] sm:$0xff] %vm130, 0.0
    %136 = vst.msk [vmem:[#allocation2 + $0x20] sm:$0xff] %vm130, 0.0
    %137 = vst.msk [vmem:[#allocation2 + $0x28] sm:$0x3f] %vm133, 0.0
    %138 = vst.msk [vmem:[#allocation2 + $0x30] sm:$0xff] %vm130, 0.0
    %139 = vst.msk [vmem:[#allocation2 + $0x38] sm:$0xff] %vm130, 0.0
    %140 = vst.msk [vmem:[#allocation2 + $0x40] sm:$0x3f] %vm133, 0.0
    %141 = vst.msk [vmem:[#allocation2 + $0x48] sm:$0xff] %vm130, 0.0
    %142 = vst.msk [vmem:[#allocation2 + $0x50] sm:$0xff] %vm130, 0.0
    %143 = vst.msk [vmem:[#allocation2 + $0x58] sm:$0x3f] %vm133, 0.0
    %vm144 = vcmask 179352
    %145 = vst.msk [vmem:[#allocation2] sm:$0xff] %vm144, 0.0
    %146 = vst.msk [vmem:[#allocation2 + $0x8] sm:$0xff] %vm144, 0.0
    %vm147 = vcmask 177304
    %148 = vst.msk [vmem:[#allocation2 + $0x10] sm:$0x3f] %vm147, 0.0
    %149 = vst.msk [vmem:[#allocation2 + $0x18] sm:$0xff] %vm144, 0.0
    %150 = vst.msk [vmem:[#allocation2 + $0x20] sm:$0xff] %vm144, 0.0
    %151 = vst.msk [vmem:[#allocation2 + $0x28] sm:$0x3f] %vm147, 0.0
    %152 = vst.msk [vmem:[#allocation2 + $0x30] sm:$0xff] %vm144, 0.0
    %153 = vst.msk [vmem:[#allocation2 + $0x38] sm:$0xff] %vm144, 0.0
    %154 = vst.msk [vmem:[#allocation2 + $0x40] sm:$0x3f] %vm147, 0.0
    %155 = vst.msk [vmem:[#allocation2 + $0x48] sm:$0xff] %vm144, 0.0
    %156 = vst.msk [vmem:[#allocation2 + $0x50] sm:$0xff] %vm144, 0.0
    %157 = vst.msk [vmem:[#allocation2 + $0x58] sm:$0x3f] %vm147, 0.0
    %162 = vrot.lane.b32.xlu0 %v89, 3
    %v163 = vpop.permute.xlu0 %162
    %164 = vrot.lane.b32.xlu0 %v90, 3
    %v165 = vpop.permute.xlu0 %164
    %166 = vrot.lane.b32.xlu0 %v91, 3
    %v167 = vpop.permute.xlu0 %166
    %168 = vrot.lane.b32.xlu0 %v92, 3
    %v169 = vpop.permute.xlu0 %168
    %vm174 = vcmask 154648
    %175 = vst.msk [vmem:[#allocation2 + $0x3] sm:$0xff] %vm174, %v163
    %176 = vst.msk [vmem:[#allocation2 + $0xb] sm:$0xff] %vm174, %v165
    %177 = vst.msk [vmem:[#allocation2 + $0x1b] sm:$0xff] %vm174, %v167
    %178 = vst.msk [vmem:[#allocation2 + $0x23] sm:$0xff] %vm174, %v169
    %183 = vrot.lane.b32.xlu0 %v99, 3
    %v184 = vpop.permute.xlu0 %183
    %185 = vrot.lane.b32.xlu0 %v106, 3
    %v186 = vpop.permute.xlu0 %185
    %187 = vrot.lane.b32.xlu0 %v113, 3
    %v188 = vpop.permute.xlu0 %187
    %189 = vrot.lane.b32.xlu0 %v120, 3
    %v190 = vpop.permute.xlu0 %189
    %s195 = scalar_lea.vmem [#allocation2], 48
    %196 = vst.msk [vmem:[%s195 + $0x3] sm:$0xff] %vm174, %v184
    %197 = vst.msk [vmem:[%s195 + $0xb] sm:$0xff] %vm174, %v186
    %198 = vst.msk [vmem:[%s195 + $0x1b] sm:$0xff] %vm174, %v188
    %199 = vst.msk [vmem:[%s195 + $0x23] sm:$0xff] %vm174, %v190
    %s200 = sld [smem:[#allocation3]]
    %v201 = vstv %s200
    %v202 = vadd.f32 %v201, 0.0
    %v203 = vld [vmem:[#allocation2] sm:$0xff]
    %v204 = vld [vmem:[#allocation2 + $0x8] sm:$0xff]
    %v205 = vld [vmem:[#allocation2 + $0x18] sm:$0xff]
    %v206 = vld [vmem:[#allocation2 + $0x20] sm:$0xff]
    %s207 = sld [smem:[#allocation8]]
    %v208 = vstv %s207
    %v209 = vmul.f32 %v208, %v203
    %v210 = vmul.f32 %v208, %v204
    %v211 = vmul.f32 %v208, %v205
    %v212 = vmul.f32 %v208, %v206
    %v213 = vadd.f32 %v202, %v209
    %v214 = vadd.f32 %v202, %v210
    %v215 = vadd.f32 %v202, %v211
    %v216 = vadd.f32 %v202, %v212
    %s217 = sld [smem:[#allocation8 + $0x1]]
    %v218 = vstv %s217
    %v219 = vmul.f32 %v218, %v203
    %v220 = vmul.f32 %v218, %v204
    %v221 = vmul.f32 %v218, %v205
    %v222 = vmul.f32 %v218, %v206
    %227 = vrot.lane.b32.xlu0 %v219, 127
    %v228 = vpop.permute.xlu0 %227
    %229 = vrot.lane.b32.xlu0 %v220, 127
    %v230 = vpop.permute.xlu0 %229
    %231 = vrot.lane.b32.xlu0 %v221, 127
    %v232 = vpop.permute.xlu0 %231
    %233 = vrot.lane.b32.xlu0 %v222, 127
    %v234 = vpop.permute.xlu0 %233
    %v239 = vadd.f32 %v213, %v228
    %v240 = vadd.f32 %v214, %v230
    %v241 = vadd.f32 %v215, %v232
    %v242 = vadd.f32 %v216, %v234
    %s243 = sld [smem:[#allocation8 + $0x2]]
    %v244 = vstv %s243
    %v245 = vmul.f32 %v244, %v203
    %v246 = vmul.f32 %v244, %v204
    %v247 = vmul.f32 %v244, %v205
    %v248 = vmul.f32 %v244, %v206
    %253 = vrot.lane.b32.xlu0 %v245, 126
    %v254 = vpop.permute.xlu0 %253
    %255 = vrot.lane.b32.xlu0 %v246, 126
    %v256 = vpop.permute.xlu0 %255
    %257 = vrot.lane.b32.xlu0 %v247, 126
    %v258 = vpop.permute.xlu0 %257
    %259 = vrot.lane.b32.xlu0 %v248, 126
    %v260 = vpop.permute.xlu0 %259
    %v265 = vadd.f32 %v239, %v254
    %v266 = vadd.f32 %v240, %v256
    %v267 = vadd.f32 %v241, %v258
    %v268 = vadd.f32 %v242, %v260
    %s269 = sld [smem:[#allocation8 + $0x3]]
    %v270 = vstv %s269
    %v271 = vmul.f32 %v270, %v203
    %v272 = vmul.f32 %v270, %v204
    %v273 = vmul.f32 %v270, %v205
    %v274 = vmul.f32 %v270, %v206
    %279 = vrot.lane.b32.xlu0 %v271, 125
    %v280 = vpop.permute.xlu0 %279
    %281 = vrot.lane.b32.xlu0 %v272, 125
    %v282 = vpop.permute.xlu0 %281
    %283 = vrot.lane.b32.xlu0 %v273, 125
    %v284 = vpop.permute.xlu0 %283
    %285 = vrot.lane.b32.xlu0 %v274, 125
    %v286 = vpop.permute.xlu0 %285
    %v291 = vadd.f32 %v265, %v280
    %v292 = vadd.f32 %v266, %v282
    %v293 = vadd.f32 %v267, %v284
    %v294 = vadd.f32 %v268, %v286
    %s295 = sld [smem:[#allocation8 + $0x4]]
    %v296 = vstv %s295
    %v297 = vmul.f32 %v296, %v203
    %v298 = vmul.f32 %v296, %v204
    %v299 = vmul.f32 %v296, %v205
    %v300 = vmul.f32 %v296, %v206
    %305 = vrot.lane.b32.xlu0 %v297, 124
    %v306 = vpop.permute.xlu0 %305
    %307 = vrot.lane.b32.xlu0 %v298, 124
    %v308 = vpop.permute.xlu0 %307
    %309 = vrot.lane.b32.xlu0 %v299, 124
    %v310 = vpop.permute.xlu0 %309
    %311 = vrot.lane.b32.xlu0 %v300, 124
    %v312 = vpop.permute.xlu0 %311
    %v317 = vadd.f32 %v291, %v306
    %v318 = vadd.f32 %v292, %v308
    %v319 = vadd.f32 %v293, %v310
    %v320 = vadd.f32 %v294, %v312
    %s321 = sld [smem:[#allocation8 + $0x5]]
    %v322 = vstv %s321
    %v323 = vmul.f32 %v322, %v203
    %v324 = vmul.f32 %v322, %v204
    %v325 = vmul.f32 %v322, %v205
    %v326 = vmul.f32 %v322, %v206
    %331 = vrot.lane.b32.xlu0 %v323, 123
    %v332 = vpop.permute.xlu0 %331
    %333 = vrot.lane.b32.xlu0 %v324, 123
    %v334 = vpop.permute.xlu0 %333
    %335 = vrot.lane.b32.xlu0 %v325, 123
    %v336 = vpop.permute.xlu0 %335
    %337 = vrot.lane.b32.xlu0 %v326, 123
    %v338 = vpop.permute.xlu0 %337
    %v343 = vadd.f32 %v317, %v332
    %v344 = vadd.f32 %v318, %v334
    %v345 = vadd.f32 %v319, %v336
    %v346 = vadd.f32 %v320, %v338
    %s347 = sld [smem:[#allocation8 + $0x6]]
    %v348 = vstv %s347
    %v349 = vmul.f32 %v348, %v203
    %v350 = vmul.f32 %v348, %v204
    %v351 = vmul.f32 %v348, %v205
    %v352 = vmul.f32 %v348, %v206
    %357 = vrot.lane.b32.xlu0 %v349, 122
    %v358 = vpop.permute.xlu0 %357
    %359 = vrot.lane.b32.xlu0 %v350, 122
    %v360 = vpop.permute.xlu0 %359
    %361 = vrot.lane.b32.xlu0 %v351, 122
    %v362 = vpop.permute.xlu0 %361
    %363 = vrot.lane.b32.xlu0 %v352, 122
    %v364 = vpop.permute.xlu0 %363
    %v369 = vadd.f32 %v343, %v358
    %v370 = vadd.f32 %v344, %v360
    %v371 = vadd.f32 %v345, %v362
    %v372 = vadd.f32 %v346, %v364
    %v373 = vld [vmem:[#allocation2 + $0x1] sm:$0xff]
    %v374 = vld [vmem:[#allocation2 + $0x9] sm:$0xff]
    %v375 = vld [vmem:[#allocation2 + $0x19] sm:$0xff]
    %v376 = vld [vmem:[#allocation2 + $0x21] sm:$0xff]
    %s377 = sld [smem:[#allocation8 + $0x7]]
    %v378 = vstv %s377
    %v379 = vmul.f32 %v378, %v373
    %v380 = vmul.f32 %v378, %v374
    %v381 = vmul.f32 %v378, %v375
    %v382 = vmul.f32 %v378, %v376
    %v383 = vadd.f32 %v369, %v379
    %v384 = vadd.f32 %v370, %v380
    %v385 = vadd.f32 %v371, %v381
    %v386 = vadd.f32 %v372, %v382
    %s387 = sld [smem:[#allocation8 + $0x8]]
    %v388 = vstv %s387
    %v389 = vmul.f32 %v388, %v373
    %v390 = vmul.f32 %v388, %v374
    %v391 = vmul.f32 %v388, %v375
    %v392 = vmul.f32 %v388, %v376
    %397 = vrot.lane.b32.xlu0 %v389, 127
    %v398 = vpop.permute.xlu0 %397
    %399 = vrot.lane.b32.xlu0 %v390, 127
    %v400 = vpop.permute.xlu0 %399
    %401 = vrot.lane.b32.xlu0 %v391, 127
    %v402 = vpop.permute.xlu0 %401
    %403 = vrot.lane.b32.xlu0 %v392, 127
    %v404 = vpop.permute.xlu0 %403
    %v409 = vadd.f32 %v383, %v398
    %v410 = vadd.f32 %v384, %v400
    %v411 = vadd.f32 %v385, %v402
    %v412 = vadd.f32 %v386, %v404
    %s413 = sld [smem:[#allocation8 + $0x9]]
    %v414 = vstv %s413
    %v415 = vmul.f32 %v414, %v373
    %v416 = vmul.f32 %v414, %v374
    %v417 = vmul.f32 %v414, %v375
    %v418 = vmul.f32 %v414, %v376
    %423 = vrot.lane.b32.xlu0 %v415, 126
    %v424 = vpop.permute.xlu0 %423
    %425 = vrot.lane.b32.xlu0 %v416, 126
    %v426 = vpop.permute.xlu0 %425
    %427 = vrot.lane.b32.xlu0 %v417, 126
    %v428 = vpop.permute.xlu0 %427
    %429 = vrot.lane.b32.xlu0 %v418, 126
    %v430 = vpop.permute.xlu0 %429
    %v435 = vadd.f32 %v409, %v424
    %v436 = vadd.f32 %v410, %v426
    %v437 = vadd.f32 %v411, %v428
    %v438 = vadd.f32 %v412, %v430
    %s439 = sld [smem:[#allocation8 + $0xa]]
    %v440 = vstv %s439
    %v441 = vmul.f32 %v440, %v373
    %v442 = vmul.f32 %v440, %v374
    %v443 = vmul.f32 %v440, %v375
    %v444 = vmul.f32 %v440, %v376
    %449 = vrot.lane.b32.xlu0 %v441, 125
    %v450 = vpop.permute.xlu0 %449
    %451 = vrot.lane.b32.xlu0 %v442, 125
    %v452 = vpop.permute.xlu0 %451
    %453 = vrot.lane.b32.xlu0 %v443, 125
    %v454 = vpop.permute.xlu0 %453
    %455 = vrot.lane.b32.xlu0 %v444, 125
    %v456 = vpop.permute.xlu0 %455
    %v461 = vadd.f32 %v435, %v450
    %v462 = vadd.f32 %v436, %v452
    %v463 = vadd.f32 %v437, %v454
    %v464 = vadd.f32 %v438, %v456
    %s465 = sld [smem:[#allocation8 + $0xb]]
    %v466 = vstv %s465
    %v467 = vmul.f32 %v466, %v373
    %v468 = vmul.f32 %v466, %v374
    %v469 = vmul.f32 %v466, %v375
    %v470 = vmul.f32 %v466, %v376
    %475 = vrot.lane.b32.xlu0 %v467, 124
    %v476 = vpop.permute.xlu0 %475
    %477 = vrot.lane.b32.xlu0 %v468, 124
    %v478 = vpop.permute.xlu0 %477
    %479 = vrot.lane.b32.xlu0 %v469, 124
    %v480 = vpop.permute.xlu0 %479
    %481 = vrot.lane.b32.xlu0 %v470, 124
    %v482 = vpop.permute.xlu0 %481
    %v487 = vadd.f32 %v461, %v476
    %v488 = vadd.f32 %v462, %v478
    %v489 = vadd.f32 %v463, %v480
    %v490 = vadd.f32 %v464, %v482
    %s491 = sld [smem:[#allocation8 + $0xc]]
    %v492 = vstv %s491
    %v493 = vmul.f32 %v492, %v373
    %v494 = vmul.f32 %v492, %v374
    %v495 = vmul.f32 %v492, %v375
    %v496 = vmul.f32 %v492, %v376
    %501 = vrot.lane.b32.xlu0 %v493, 123
    %v502 = vpop.permute.xlu0 %501
    %503 = vrot.lane.b32.xlu0 %v494, 123
    %v504 = vpop.permute.xlu0 %503
    %505 = vrot.lane.b32.xlu0 %v495, 123
    %v506 = vpop.permute.xlu0 %505
    %507 = vrot.lane.b32.xlu0 %v496, 123
    %v508 = vpop.permute.xlu0 %507
    %v513 = vadd.f32 %v487, %v502
    %v514 = vadd.f32 %v488, %v504
    %v515 = vadd.f32 %v489, %v506
    %v516 = vadd.f32 %v490, %v508
    %s517 = sld [smem:[#allocation8 + $0xd]]
    %v518 = vstv %s517
    %v519 = vmul.f32 %v518, %v373
    %v520 = vmul.f32 %v518, %v374
    %v521 = vmul.f32 %v518, %v375
    %v522 = vmul.f32 %v518, %v376
    %527 = vrot.lane.b32.xlu0 %v519, 122
    %v528 = vpop.permute.xlu0 %527
    %529 = vrot.lane.b32.xlu0 %v520, 122
    %v530 = vpop.permute.xlu0 %529
    %531 = vrot.lane.b32.xlu0 %v521, 122
    %v532 = vpop.permute.xlu0 %531
    %533 = vrot.lane.b32.xlu0 %v522, 122
    %v534 = vpop.permute.xlu0 %533
    %v539 = vadd.f32 %v513, %v528
    %v540 = vadd.f32 %v514, %v530
    %v541 = vadd.f32 %v515, %v532
    %v542 = vadd.f32 %v516, %v534
    %v543 = vld [vmem:[#allocation2 + $0x2] sm:$0xff]
    %v544 = vld [vmem:[#allocation2 + $0xa] sm:$0xff]
    %v545 = vld [vmem:[#allocation2 + $0x1a] sm:$0xff]
    %v546 = vld [vmem:[#allocation2 + $0x22] sm:$0xff]
    %s547 = sld [smem:[#allocation8 + $0xe]]
    %v548 = vstv %s547
    %v549 = vmul.f32 %v548, %v543
    %v550 = vmul.f32 %v548, %v544
    %v551 = vmul.f32 %v548, %v545
    %v552 = vmul.f32 %v548, %v546
    %v553 = vadd.f32 %v539, %v549
    %v554 = vadd.f32 %v540, %v550
    %v555 = vadd.f32 %v541, %v551
    %v556 = vadd.f32 %v542, %v552
    %s557 = sld [smem:[#allocation8 + $0xf]]
    %v558 = vstv %s557
    %v559 = vmul.f32 %v558, %v543
    %v560 = vmul.f32 %v558, %v544
    %v561 = vmul.f32 %v558, %v545
    %v562 = vmul.f32 %v558, %v546
    %567 = vrot.lane.b32.xlu0 %v559, 127
    %v568 = vpop.permute.xlu0 %567
    %569 = vrot.lane.b32.xlu0 %v560, 127
    %v570 = vpop.permute.xlu0 %569
    %571 = vrot.lane.b32.xlu0 %v561, 127
    %v572 = vpop.permute.xlu0 %571
    %573 = vrot.lane.b32.xlu0 %v562, 127
    %v574 = vpop.permute.xlu0 %573
    %v579 = vadd.f32 %v553, %v568
    %v580 = vadd.f32 %v554, %v570
    %v581 = vadd.f32 %v555, %v572
    %v582 = vadd.f32 %v556, %v574
    %s583 = sld [smem:[#allocation8 + $0x10]]
    %v584 = vstv %s583
    %v585 = vmul.f32 %v584, %v543
    %v586 = vmul.f32 %v584, %v544
    %v587 = vmul.f32 %v584, %v545
    %v588 = vmul.f32 %v584, %v546
    %593 = vrot.lane.b32.xlu0 %v585, 126
    %v594 = vpop.permute.xlu0 %593
    %595 = vrot.lane.b32.xlu0 %v586, 126
    %v596 = vpop.permute.xlu0 %595
    %597 = vrot.lane.b32.xlu0 %v587, 126
    %v598 = vpop.permute.xlu0 %597
    %599 = vrot.lane.b32.xlu0 %v588, 126
    %v600 = vpop.permute.xlu0 %599
    %v605 = vadd.f32 %v579, %v594
    %v606 = vadd.f32 %v580, %v596
    %v607 = vadd.f32 %v581, %v598
    %v608 = vadd.f32 %v582, %v600
    %s609 = sld [smem:[#allocation8 + $0x11]]
    %v610 = vstv %s609
    %v611 = vmul.f32 %v610, %v543
    %v612 = vmul.f32 %v610, %v544
    %v613 = vmul.f32 %v610, %v545
    %v614 = vmul.f32 %v610, %v546
    %619 = vrot.lane.b32.xlu0 %v611, 125
    %v620 = vpop.permute.xlu0 %619
    %621 = vrot.lane.b32.xlu0 %v612, 125
    %v622 = vpop.permute.xlu0 %621
    %623 = vrot.lane.b32.xlu0 %v613, 125
    %v624 = vpop.permute.xlu0 %623
    %625 = vrot.lane.b32.xlu0 %v614, 125
    %v626 = vpop.permute.xlu0 %625
    %v631 = vadd.f32 %v605, %v620
    %v632 = vadd.f32 %v606, %v622
    %v633 = vadd.f32 %v607, %v624
    %v634 = vadd.f32 %v608, %v626
    %s635 = sld [smem:[#allocation8 + $0x12]]
    %v636 = vstv %s635
    %v637 = vmul.f32 %v636, %v543
    %v638 = vmul.f32 %v636, %v544
    %v639 = vmul.f32 %v636, %v545
    %v640 = vmul.f32 %v636, %v546
    %645 = vrot.lane.b32.xlu0 %v637, 124
    %v646 = vpop.permute.xlu0 %645
    %647 = vrot.lane.b32.xlu0 %v638, 124
    %v648 = vpop.permute.xlu0 %647
    %649 = vrot.lane.b32.xlu0 %v639, 124
    %v650 = vpop.permute.xlu0 %649
    %651 = vrot.lane.b32.xlu0 %v640, 124
    %v652 = vpop.permute.xlu0 %651
    %v657 = vadd.f32 %v631, %v646
    %v658 = vadd.f32 %v632, %v648
    %v659 = vadd.f32 %v633, %v650
    %v660 = vadd.f32 %v634, %v652
    %s661 = sld [smem:[#allocation8 + $0x13]]
    %v662 = vstv %s661
    %v663 = vmul.f32 %v662, %v543
    %v664 = vmul.f32 %v662, %v544
    %v665 = vmul.f32 %v662, %v545
    %v666 = vmul.f32 %v662, %v546
    %671 = vrot.lane.b32.xlu0 %v663, 123
    %v672 = vpop.permute.xlu0 %671
    %673 = vrot.lane.b32.xlu0 %v664, 123
    %v674 = vpop.permute.xlu0 %673
    %675 = vrot.lane.b32.xlu0 %v665, 123
    %v676 = vpop.permute.xlu0 %675
    %677 = vrot.lane.b32.xlu0 %v666, 123
    %v678 = vpop.permute.xlu0 %677
    %v683 = vadd.f32 %v657, %v672
    %v684 = vadd.f32 %v658, %v674
    %v685 = vadd.f32 %v659, %v676
    %v686 = vadd.f32 %v660, %v678
    %s687 = sld [smem:[#allocation8 + $0x14]]
    %v688 = vstv %s687
    %v689 = vmul.f32 %v688, %v543
    %v690 = vmul.f32 %v688, %v544
    %v691 = vmul.f32 %v688, %v545
    %v692 = vmul.f32 %v688, %v546
    %697 = vrot.lane.b32.xlu0 %v689, 122
    %v698 = vpop.permute.xlu0 %697
    %699 = vrot.lane.b32.xlu0 %v690, 122
    %v700 = vpop.permute.xlu0 %699
    %701 = vrot.lane.b32.xlu0 %v691, 122
    %v702 = vpop.permute.xlu0 %701
    %703 = vrot.lane.b32.xlu0 %v692, 122
    %v704 = vpop.permute.xlu0 %703
    %v709 = vadd.f32 %v683, %v698
    %v710 = vadd.f32 %v684, %v700
    %v711 = vadd.f32 %v685, %v702
    %v712 = vadd.f32 %v686, %v704
    %v713 = vld [vmem:[#allocation2 + $0x3] sm:$0xff]
    %v714 = vld [vmem:[#allocation2 + $0xb] sm:$0xff]
    %v715 = vld [vmem:[#allocation2 + $0x1b] sm:$0xff]
    %v716 = vld [vmem:[#allocation2 + $0x23] sm:$0xff]
    %s717 = sld [smem:[#allocation8 + $0x15]]
    %v718 = vstv %s717
    %v719 = vmul.f32 %v718, %v713
    %v720 = vmul.f32 %v718, %v714
    %v721 = vmul.f32 %v718, %v715
    %v722 = vmul.f32 %v718, %v716
    %v723 = vadd.f32 %v709, %v719
    %v724 = vadd.f32 %v710, %v720
    %v725 = vadd.f32 %v711, %v721
    %v726 = vadd.f32 %v712, %v722
    %s727 = sld [smem:[#allocation8 + $0x16]]
    %v728 = vstv %s727
    %v729 = vmul.f32 %v728, %v713
    %v730 = vmul.f32 %v728, %v714
    %v731 = vmul.f32 %v728, %v715
    %v732 = vmul.f32 %v728, %v716
    %737 = vrot.lane.b32.xlu0 %v729, 127
    %v738 = vpop.permute.xlu0 %737
    %739 = vrot.lane.b32.xlu0 %v730, 127
    %v740 = vpop.permute.xlu0 %739
    %741 = vrot.lane.b32.xlu0 %v731, 127
    %v742 = vpop.permute.xlu0 %741
    %743 = vrot.lane.b32.xlu0 %v732, 127
    %v744 = vpop.permute.xlu0 %743
    %v749 = vadd.f32 %v723, %v738
    %v750 = vadd.f32 %v724, %v740
    %v751 = vadd.f32 %v725, %v742
    %v752 = vadd.f32 %v726, %v744
    %s753 = sld [smem:[#allocation8 + $0x17]]
    %v754 = vstv %s753
    %v755 = vmul.f32 %v754, %v713
    %v756 = vmul.f32 %v754, %v714
    %v757 = vmul.f32 %v754, %v715
    %v758 = vmul.f32 %v754, %v716
    %763 = vrot.lane.b32.xlu0 %v755, 126
    %v764 = vpop.permute.xlu0 %763
    %765 = vrot.lane.b32.xlu0 %v756, 126
    %v766 = vpop.permute.xlu0 %765
    %767 = vrot.lane.b32.xlu0 %v757, 126
    %v768 = vpop.permute.xlu0 %767
    %769 = vrot.lane.b32.xlu0 %v758, 126
    %v770 = vpop.permute.xlu0 %769
    %v775 = vadd.f32 %v749, %v764
    %v776 = vadd.f32 %v750, %v766
    %v777 = vadd.f32 %v751, %v768
    %v778 = vadd.f32 %v752, %v770
    %s779 = sld [smem:[#allocation8 + $0x18]]
    %v780 = vstv %s779
    %v781 = vmul.f32 %v780, %v713
    %v782 = vmul.f32 %v780, %v714
    %v783 = vmul.f32 %v780, %v715
    %v784 = vmul.f32 %v780, %v716
    %789 = vrot.lane.b32.xlu0 %v781, 125
    %v790 = vpop.permute.xlu0 %789
    %791 = vrot.lane.b32.xlu0 %v782, 125
    %v792 = vpop.permute.xlu0 %791
    %793 = vrot.lane.b32.xlu0 %v783, 125
    %v794 = vpop.permute.xlu0 %793
    %795 = vrot.lane.b32.xlu0 %v784, 125
    %v796 = vpop.permute.xlu0 %795
    %v801 = vadd.f32 %v775, %v790
    %v802 = vadd.f32 %v776, %v792
    %v803 = vadd.f32 %v777, %v794
    %v804 = vadd.f32 %v778, %v796
    %s805 = sld [smem:[#allocation8 + $0x19]]
    %v806 = vstv %s805
    %v807 = vmul.f32 %v806, %v713
    %v808 = vmul.f32 %v806, %v714
    %v809 = vmul.f32 %v806, %v715
    %v810 = vmul.f32 %v806, %v716
    %815 = vrot.lane.b32.xlu0 %v807, 124
    %v816 = vpop.permute.xlu0 %815
    %817 = vrot.lane.b32.xlu0 %v808, 124
    %v818 = vpop.permute.xlu0 %817
    %819 = vrot.lane.b32.xlu0 %v809, 124
    %v820 = vpop.permute.xlu0 %819
    %821 = vrot.lane.b32.xlu0 %v810, 124
    %v822 = vpop.permute.xlu0 %821
    %v827 = vadd.f32 %v801, %v816
    %v828 = vadd.f32 %v802, %v818
    %v829 = vadd.f32 %v803, %v820
    %v830 = vadd.f32 %v804, %v822
    %s831 = sld [smem:[#allocation8 + $0x1a]]
    %v832 = vstv %s831
    %v833 = vmul.f32 %v832, %v713
    %v834 = vmul.f32 %v832, %v714
    %v835 = vmul.f32 %v832, %v715
    %v836 = vmul.f32 %v832, %v716
    %841 = vrot.lane.b32.xlu0 %v833, 123
    %v842 = vpop.permute.xlu0 %841
    %843 = vrot.lane.b32.xlu0 %v834, 123
    %v844 = vpop.permute.xlu0 %843
    %845 = vrot.lane.b32.xlu0 %v835, 123
    %v846 = vpop.permute.xlu0 %845
    %847 = vrot.lane.b32.xlu0 %v836, 123
    %v848 = vpop.permute.xlu0 %847
    %v853 = vadd.f32 %v827, %v842
    %v854 = vadd.f32 %v828, %v844
    %v855 = vadd.f32 %v829, %v846
    %v856 = vadd.f32 %v830, %v848
    %s857 = sld [smem:[#allocation8 + $0x1b]]
    %v858 = vstv %s857
    %v859 = vmul.f32 %v858, %v713
    %v860 = vmul.f32 %v858, %v714
    %v861 = vmul.f32 %v858, %v715
    %v862 = vmul.f32 %v858, %v716
    %867 = vrot.lane.b32.xlu0 %v859, 122
    %v868 = vpop.permute.xlu0 %867
    %869 = vrot.lane.b32.xlu0 %v860, 122
    %v870 = vpop.permute.xlu0 %869
    %871 = vrot.lane.b32.xlu0 %v861, 122
    %v872 = vpop.permute.xlu0 %871
    %873 = vrot.lane.b32.xlu0 %v862, 122
    %v874 = vpop.permute.xlu0 %873
    %v879 = vadd.f32 %v853, %v868
    %v880 = vadd.f32 %v854, %v870
    %v881 = vadd.f32 %v855, %v872
    %v882 = vadd.f32 %v856, %v874
    %v883 = vld [vmem:[#allocation2 + $0x4] sm:$0xff]
    %v884 = vld [vmem:[#allocation2 + $0xc] sm:$0xff]
    %v885 = vld [vmem:[#allocation2 + $0x1c] sm:$0xff]
    %v886 = vld [vmem:[#allocation2 + $0x24] sm:$0xff]
    %s887 = sld [smem:[#allocation8 + $0x1c]]
    %v888 = vstv %s887
    %v889 = vmul.f32 %v888, %v883
    %v890 = vmul.f32 %v888, %v884
    %v891 = vmul.f32 %v888, %v885
    %v892 = vmul.f32 %v888, %v886
    %v893 = vadd.f32 %v879, %v889
    %v894 = vadd.f32 %v880, %v890
    %v895 = vadd.f32 %v881, %v891
    %v896 = vadd.f32 %v882, %v892
    %s897 = sld [smem:[#allocation8 + $0x1d]]
    %v898 = vstv %s897
    %v899 = vmul.f32 %v898, %v883
    %v900 = vmul.f32 %v898, %v884
    %v901 = vmul.f32 %v898, %v885
    %v902 = vmul.f32 %v898, %v886
    %907 = vrot.lane.b32.xlu0 %v899, 127
    %v908 = vpop.permute.xlu0 %907
    %909 = vrot.lane.b32.xlu0 %v900, 127
    %v910 = vpop.permute.xlu0 %909
    %911 = vrot.lane.b32.xlu0 %v901, 127
    %v912 = vpop.permute.xlu0 %911
    %913 = vrot.lane.b32.xlu0 %v902, 127
    %v914 = vpop.permute.xlu0 %913
    %v919 = vadd.f32 %v893, %v908
    %v920 = vadd.f32 %v894, %v910
    %v921 = vadd.f32 %v895, %v912
    %v922 = vadd.f32 %v896, %v914
    %s923 = sld [smem:[#allocation8 + $0x1e]]
    %v924 = vstv %s923
    %v925 = vmul.f32 %v924, %v883
    %v926 = vmul.f32 %v924, %v884
    %v927 = vmul.f32 %v924, %v885
    %v928 = vmul.f32 %v924, %v886
    %933 = vrot.lane.b32.xlu0 %v925, 126
    %v934 = vpop.permute.xlu0 %933
    %935 = vrot.lane.b32.xlu0 %v926, 126
    %v936 = vpop.permute.xlu0 %935
    %937 = vrot.lane.b32.xlu0 %v927, 126
    %v938 = vpop.permute.xlu0 %937
    %939 = vrot.lane.b32.xlu0 %v928, 126
    %v940 = vpop.permute.xlu0 %939
    %v945 = vadd.f32 %v919, %v934
    %v946 = vadd.f32 %v920, %v936
    %v947 = vadd.f32 %v921, %v938
    %v948 = vadd.f32 %v922, %v940
    %s949 = sld [smem:[#allocation8 + $0x1f]]
    %v950 = vstv %s949
    %v951 = vmul.f32 %v950, %v883
    %v952 = vmul.f32 %v950, %v884
    %v953 = vmul.f32 %v950, %v885
    %v954 = vmul.f32 %v950, %v886
    %959 = vrot.lane.b32.xlu0 %v951, 125
    %v960 = vpop.permute.xlu0 %959
    %961 = vrot.lane.b32.xlu0 %v952, 125
    %v962 = vpop.permute.xlu0 %961
    %963 = vrot.lane.b32.xlu0 %v953, 125
    %v964 = vpop.permute.xlu0 %963
    %965 = vrot.lane.b32.xlu0 %v954, 125
    %v966 = vpop.permute.xlu0 %965
    %v971 = vadd.f32 %v945, %v960
    %v972 = vadd.f32 %v946, %v962
    %v973 = vadd.f32 %v947, %v964
    %v974 = vadd.f32 %v948, %v966
    %s975 = sld [smem:[#allocation8 + $0x20]]
    %v976 = vstv %s975
    %v977 = vmul.f32 %v976, %v883
    %v978 = vmul.f32 %v976, %v884
    %v979 = vmul.f32 %v976, %v885
    %v980 = vmul.f32 %v976, %v886
    %985 = vrot.lane.b32.xlu0 %v977, 124
    %v986 = vpop.permute.xlu0 %985
    %987 = vrot.lane.b32.xlu0 %v978, 124
    %v988 = vpop.permute.xlu0 %987
    %989 = vrot.lane.b32.xlu0 %v979, 124
    %v990 = vpop.permute.xlu0 %989
    %991 = vrot.lane.b32.xlu0 %v980, 124
    %v992 = vpop.permute.xlu0 %991
    %v997 = vadd.f32 %v971, %v986
    %v998 = vadd.f32 %v972, %v988
    %v999 = vadd.f32 %v973, %v990
    %v1000 = vadd.f32 %v974, %v992
    %s1001 = sld [smem:[#allocation8 + $0x21]]
    %v1002 = vstv %s1001
    %v1003 = vmul.f32 %v1002, %v883
    %v1004 = vmul.f32 %v1002, %v884
    %v1005 = vmul.f32 %v1002, %v885
    %v1006 = vmul.f32 %v1002, %v886
    %1011 = vrot.lane.b32.xlu0 %v1003, 123
    %v1012 = vpop.permute.xlu0 %1011
    %1013 = vrot.lane.b32.xlu0 %v1004, 123
    %v1014 = vpop.permute.xlu0 %1013
    %1015 = vrot.lane.b32.xlu0 %v1005, 123
    %v1016 = vpop.permute.xlu0 %1015
    %1017 = vrot.lane.b32.xlu0 %v1006, 123
    %v1018 = vpop.permute.xlu0 %1017
    %v1023 = vadd.f32 %v997, %v1012
    %v1024 = vadd.f32 %v998, %v1014
    %v1025 = vadd.f32 %v999, %v1016
    %v1026 = vadd.f32 %v1000, %v1018
    %s1027 = sld [smem:[#allocation8 + $0x22]]
    %v1028 = vstv %s1027
    %v1029 = vmul.f32 %v1028, %v883
    %v1030 = vmul.f32 %v1028, %v884
    %v1031 = vmul.f32 %v1028, %v885
    %v1032 = vmul.f32 %v1028, %v886
    %1037 = vrot.lane.b32.xlu0 %v1029, 122
    %v1038 = vpop.permute.xlu0 %1037
    %1039 = vrot.lane.b32.xlu0 %v1030, 122
    %v1040 = vpop.permute.xlu0 %1039
    %1041 = vrot.lane.b32.xlu0 %v1031, 122
    %v1042 = vpop.permute.xlu0 %1041
    %1043 = vrot.lane.b32.xlu0 %v1032, 122
    %v1044 = vpop.permute.xlu0 %1043
    %v1049 = vadd.f32 %v1023, %v1038
    %v1050 = vadd.f32 %v1024, %v1040
    %v1051 = vadd.f32 %v1025, %v1042
    %v1052 = vadd.f32 %v1026, %v1044
    %v1053 = vld [vmem:[#allocation2 + $0x5] sm:$0xff]
    %v1054 = vld [vmem:[#allocation2 + $0xd] sm:$0xff]
    %v1055 = vld [vmem:[#allocation2 + $0x1d] sm:$0xff]
    %v1056 = vld [vmem:[#allocation2 + $0x25] sm:$0xff]
    %s1057 = sld [smem:[#allocation8 + $0x23]]
    %v1058 = vstv %s1057
    %v1059 = vmul.f32 %v1058, %v1053
    %v1060 = vmul.f32 %v1058, %v1054
    %v1061 = vmul.f32 %v1058, %v1055
    %v1062 = vmul.f32 %v1058, %v1056
    %v1063 = vadd.f32 %v1049, %v1059
    %v1064 = vadd.f32 %v1050, %v1060
    %v1065 = vadd.f32 %v1051, %v1061
    %v1066 = vadd.f32 %v1052, %v1062
    %s1067 = sld [smem:[#allocation8 + $0x24]]
    %v1068 = vstv %s1067
    %v1069 = vmul.f32 %v1068, %v1053
    %v1070 = vmul.f32 %v1068, %v1054
    %v1071 = vmul.f32 %v1068, %v1055
    %v1072 = vmul.f32 %v1068, %v1056
    %1077 = vrot.lane.b32.xlu0 %v1069, 127
    %v1078 = vpop.permute.xlu0 %1077
    %1079 = vrot.lane.b32.xlu0 %v1070, 127
    %v1080 = vpop.permute.xlu0 %1079
    %1081 = vrot.lane.b32.xlu0 %v1071, 127
    %v1082 = vpop.permute.xlu0 %1081
    %1083 = vrot.lane.b32.xlu0 %v1072, 127
    %v1084 = vpop.permute.xlu0 %1083
    %v1089 = vadd.f32 %v1063, %v1078
    %v1090 = vadd.f32 %v1064, %v1080
    %v1091 = vadd.f32 %v1065, %v1082
    %v1092 = vadd.f32 %v1066, %v1084
    %s1093 = sld [smem:[#allocation8 + $0x25]]
    %v1094 = vstv %s1093
    %v1095 = vmul.f32 %v1094, %v1053
    %v1096 = vmul.f32 %v1094, %v1054
    %v1097 = vmul.f32 %v1094, %v1055
    %v1098 = vmul.f32 %v1094, %v1056
    %1103 = vrot.lane.b32.xlu0 %v1095, 126
    %v1104 = vpop.permute.xlu0 %1103
    %1105 = vrot.lane.b32.xlu0 %v1096, 126
    %v1106 = vpop.permute.xlu0 %1105
    %1107 = vrot.lane.b32.xlu0 %v1097, 126
    %v1108 = vpop.permute.xlu0 %1107
    %1109 = vrot.lane.b32.xlu0 %v1098, 126
    %v1110 = vpop.permute.xlu0 %1109
    %v1115 = vadd.f32 %v1089, %v1104
    %v1116 = vadd.f32 %v1090, %v1106
    %v1117 = vadd.f32 %v1091, %v1108
    %v1118 = vadd.f32 %v1092, %v1110
    %s1119 = sld [smem:[#allocation8 + $0x26]]
    %v1120 = vstv %s1119
    %v1121 = vmul.f32 %v1120, %v1053
    %v1122 = vmul.f32 %v1120, %v1054
    %v1123 = vmul.f32 %v1120, %v1055
    %v1124 = vmul.f32 %v1120, %v1056
    %1129 = vrot.lane.b32.xlu0 %v1121, 125
    %v1130 = vpop.permute.xlu0 %1129
    %1131 = vrot.lane.b32.xlu0 %v1122, 125
    %v1132 = vpop.permute.xlu0 %1131
    %1133 = vrot.lane.b32.xlu0 %v1123, 125
    %v1134 = vpop.permute.xlu0 %1133
    %1135 = vrot.lane.b32.xlu0 %v1124, 125
    %v1136 = vpop.permute.xlu0 %1135
    %v1141 = vadd.f32 %v1115, %v1130
    %v1142 = vadd.f32 %v1116, %v1132
    %v1143 = vadd.f32 %v1117, %v1134
    %v1144 = vadd.f32 %v1118, %v1136
    %s1145 = sld [smem:[#allocation8 + $0x27]]
    %v1146 = vstv %s1145
    %v1147 = vmul.f32 %v1146, %v1053
    %v1148 = vmul.f32 %v1146, %v1054
    %v1149 = vmul.f32 %v1146, %v1055
    %v1150 = vmul.f32 %v1146, %v1056
    %1155 = vrot.lane.b32.xlu0 %v1147, 124
    %v1156 = vpop.permute.xlu0 %1155
    %1157 = vrot.lane.b32.xlu0 %v1148, 124
    %v1158 = vpop.permute.xlu0 %1157
    %1159 = vrot.lane.b32.xlu0 %v1149, 124
    %v1160 = vpop.permute.xlu0 %1159
    %1161 = vrot.lane.b32.xlu0 %v1150, 124
    %v1162 = vpop.permute.xlu0 %1161
    %v1167 = vadd.f32 %v1141, %v1156
    %v1168 = vadd.f32 %v1142, %v1158
    %v1169 = vadd.f32 %v1143, %v1160
    %v1170 = vadd.f32 %v1144, %v1162
    %s1171 = sld [smem:[#allocation8 + $0x28]]
    %v1172 = vstv %s1171
    %v1173 = vmul.f32 %v1172, %v1053
    %v1174 = vmul.f32 %v1172, %v1054
    %v1175 = vmul.f32 %v1172, %v1055
    %v1176 = vmul.f32 %v1172, %v1056
    %1181 = vrot.lane.b32.xlu0 %v1173, 123
    %v1182 = vpop.permute.xlu0 %1181
    %1183 = vrot.lane.b32.xlu0 %v1174, 123
    %v1184 = vpop.permute.xlu0 %1183
    %1185 = vrot.lane.b32.xlu0 %v1175, 123
    %v1186 = vpop.permute.xlu0 %1185
    %1187 = vrot.lane.b32.xlu0 %v1176, 123
    %v1188 = vpop.permute.xlu0 %1187
    %v1193 = vadd.f32 %v1167, %v1182
    %v1194 = vadd.f32 %v1168, %v1184
    %v1195 = vadd.f32 %v1169, %v1186
    %v1196 = vadd.f32 %v1170, %v1188
    %s1197 = sld [smem:[#allocation8 + $0x29]]
    %v1198 = vstv %s1197
    %v1199 = vmul.f32 %v1198, %v1053
    %v1200 = vmul.f32 %v1198, %v1054
    %v1201 = vmul.f32 %v1198, %v1055
    %v1202 = vmul.f32 %v1198, %v1056
    %1207 = vrot.lane.b32.xlu0 %v1199, 122
    %v1208 = vpop.permute.xlu0 %1207
    %1209 = vrot.lane.b32.xlu0 %v1200, 122
    %v1210 = vpop.permute.xlu0 %1209
    %1211 = vrot.lane.b32.xlu0 %v1201, 122
    %v1212 = vpop.permute.xlu0 %1211
    %1213 = vrot.lane.b32.xlu0 %v1202, 122
    %v1214 = vpop.permute.xlu0 %1213
    %v1219 = vadd.f32 %v1193, %v1208
    %v1220 = vadd.f32 %v1194, %v1210
    %v1221 = vadd.f32 %v1195, %v1212
    %v1222 = vadd.f32 %v1196, %v1214
    %v1223 = vld [vmem:[#allocation2 + $0x6] sm:$0xff]
    %v1224 = vld [vmem:[#allocation2 + $0xe] sm:$0xff]
    %v1225 = vld [vmem:[#allocation2 + $0x1e] sm:$0xff]
    %v1226 = vld [vmem:[#allocation2 + $0x26] sm:$0xff]
    %s1227 = sld [smem:[#allocation8 + $0x2a]]
    %v1228 = vstv %s1227
    %v1229 = vmul.f32 %v1228, %v1223
    %v1230 = vmul.f32 %v1228, %v1224
    %v1231 = vmul.f32 %v1228, %v1225
    %v1232 = vmul.f32 %v1228, %v1226
    %v1233 = vadd.f32 %v1219, %v1229
    %v1234 = vadd.f32 %v1220, %v1230
    %v1235 = vadd.f32 %v1221, %v1231
    %v1236 = vadd.f32 %v1222, %v1232
    %s1237 = sld [smem:[#allocation8 + $0x2b]]
    %v1238 = vstv %s1237
    %v1239 = vmul.f32 %v1238, %v1223
    %v1240 = vmul.f32 %v1238, %v1224
    %v1241 = vmul.f32 %v1238, %v1225
    %v1242 = vmul.f32 %v1238, %v1226
    %1247 = vrot.lane.b32.xlu0 %v1239, 127
    %v1248 = vpop.permute.xlu0 %1247
    %1249 = vrot.lane.b32.xlu0 %v1240, 127
    %v1250 = vpop.permute.xlu0 %1249
    %1251 = vrot.lane.b32.xlu0 %v1241, 127
    %v1252 = vpop.permute.xlu0 %1251
    %1253 = vrot.lane.b32.xlu0 %v1242, 127
    %v1254 = vpop.permute.xlu0 %1253
    %v1259 = vadd.f32 %v1233, %v1248
    %v1260 = vadd.f32 %v1234, %v1250
    %v1261 = vadd.f32 %v1235, %v1252
    %v1262 = vadd.f32 %v1236, %v1254
    %s1263 = sld [smem:[#allocation8 + $0x2c]]
    %v1264 = vstv %s1263
    %v1265 = vmul.f32 %v1264, %v1223
    %v1266 = vmul.f32 %v1264, %v1224
    %v1267 = vmul.f32 %v1264, %v1225
    %v1268 = vmul.f32 %v1264, %v1226
    %1273 = vrot.lane.b32.xlu0 %v1265, 126
    %v1274 = vpop.permute.xlu0 %1273
    %1275 = vrot.lane.b32.xlu0 %v1266, 126
    %v1276 = vpop.permute.xlu0 %1275
    %1277 = vrot.lane.b32.xlu0 %v1267, 126
    %v1278 = vpop.permute.xlu0 %1277
    %1279 = vrot.lane.b32.xlu0 %v1268, 126
    %v1280 = vpop.permute.xlu0 %1279
    %v1285 = vadd.f32 %v1259, %v1274
    %v1286 = vadd.f32 %v1260, %v1276
    %v1287 = vadd.f32 %v1261, %v1278
    %v1288 = vadd.f32 %v1262, %v1280
    %s1289 = sld [smem:[#allocation8 + $0x2d]]
    %v1290 = vstv %s1289
    %v1291 = vmul.f32 %v1290, %v1223
    %v1292 = vmul.f32 %v1290, %v1224
    %v1293 = vmul.f32 %v1290, %v1225
    %v1294 = vmul.f32 %v1290, %v1226
    %1299 = vrot.lane.b32.xlu0 %v1291, 125
    %v1300 = vpop.permute.xlu0 %1299
    %1301 = vrot.lane.b32.xlu0 %v1292, 125
    %v1302 = vpop.permute.xlu0 %1301
    %1303 = vrot.lane.b32.xlu0 %v1293, 125
    %v1304 = vpop.permute.xlu0 %1303
    %1305 = vrot.lane.b32.xlu0 %v1294, 125
    %v1306 = vpop.permute.xlu0 %1305
    %v1311 = vadd.f32 %v1285, %v1300
    %v1312 = vadd.f32 %v1286, %v1302
    %v1313 = vadd.f32 %v1287, %v1304
    %v1314 = vadd.f32 %v1288, %v1306
    %s1315 = sld [smem:[#allocation8 + $0x2e]]
    %v1316 = vstv %s1315
    %v1317 = vmul.f32 %v1316, %v1223
    %v1318 = vmul.f32 %v1316, %v1224
    %v1319 = vmul.f32 %v1316, %v1225
    %v1320 = vmul.f32 %v1316, %v1226
    %1325 = vrot.lane.b32.xlu0 %v1317, 124
    %v1326 = vpop.permute.xlu0 %1325
    %1327 = vrot.lane.b32.xlu0 %v1318, 124
    %v1328 = vpop.permute.xlu0 %1327
    %1329 = vrot.lane.b32.xlu0 %v1319, 124
    %v1330 = vpop.permute.xlu0 %1329
    %1331 = vrot.lane.b32.xlu0 %v1320, 124
    %v1332 = vpop.permute.xlu0 %1331
    %v1337 = vadd.f32 %v1311, %v1326
    %v1338 = vadd.f32 %v1312, %v1328
    %v1339 = vadd.f32 %v1313, %v1330
    %v1340 = vadd.f32 %v1314, %v1332
    %s1341 = sld [smem:[#allocation8 + $0x2f]]
    %v1342 = vstv %s1341
    %v1343 = vmul.f32 %v1342, %v1223
    %v1344 = vmul.f32 %v1342, %v1224
    %v1345 = vmul.f32 %v1342, %v1225
    %v1346 = vmul.f32 %v1342, %v1226
    %1351 = vrot.lane.b32.xlu0 %v1343, 123
    %v1352 = vpop.permute.xlu0 %1351
    %1353 = vrot.lane.b32.xlu0 %v1344, 123
    %v1354 = vpop.permute.xlu0 %1353
    %1355 = vrot.lane.b32.xlu0 %v1345, 123
    %v1356 = vpop.permute.xlu0 %1355
    %1357 = vrot.lane.b32.xlu0 %v1346, 123
    %v1358 = vpop.permute.xlu0 %1357
    %v1363 = vadd.f32 %v1337, %v1352
    %v1364 = vadd.f32 %v1338, %v1354
    %v1365 = vadd.f32 %v1339, %v1356
    %v1366 = vadd.f32 %v1340, %v1358
    %s1367 = sld [smem:[#allocation8 + $0x30]]
    %v1368 = vstv %s1367
    %v1369 = vmul.f32 %v1368, %v1223
    %v1370 = vmul.f32 %v1368, %v1224
    %v1371 = vmul.f32 %v1368, %v1225
    %v1372 = vmul.f32 %v1368, %v1226
    %1377 = vrot.lane.b32.xlu0 %v1369, 122
    %v1378 = vpop.permute.xlu0 %1377
    %1379 = vrot.lane.b32.xlu0 %v1370, 122
    %v1380 = vpop.permute.xlu0 %1379
    %1381 = vrot.lane.b32.xlu0 %v1371, 122
    %v1382 = vpop.permute.xlu0 %1381
    %1383 = vrot.lane.b32.xlu0 %v1372, 122
    %v1384 = vpop.permute.xlu0 %1383
    %v1389 = vadd.f32 %v1363, %v1378
    %v1390 = vadd.f32 %v1364, %v1380
    %v1391 = vadd.f32 %v1365, %v1382
    %v1392 = vadd.f32 %v1366, %v1384
    %v1393 = vld [vmem:[%s195] sm:$0xff]
    %v1394 = vld [vmem:[%s195 + $0x8] sm:$0xff]
    %v1395 = vld [vmem:[%s195 + $0x18] sm:$0xff]
    %v1396 = vld [vmem:[%s195 + $0x20] sm:$0xff]
    %s1397 = sld [smem:[#allocation8 + $0x31]]
    %v1398 = vstv %s1397
    %v1399 = vmul.f32 %v1398, %v1393
    %v1400 = vmul.f32 %v1398, %v1394
    %v1401 = vmul.f32 %v1398, %v1395
    %v1402 = vmul.f32 %v1398, %v1396
    %v1403 = vadd.f32 %v1389, %v1399
    %v1404 = vadd.f32 %v1390, %v1400
    %v1405 = vadd.f32 %v1391, %v1401
    %v1406 = vadd.f32 %v1392, %v1402
    %s1407 = sld [smem:[#allocation8 + $0x32]]
    %v1408 = vstv %s1407
    %v1409 = vmul.f32 %v1408, %v1393
    %v1410 = vmul.f32 %v1408, %v1394
    %v1411 = vmul.f32 %v1408, %v1395
    %v1412 = vmul.f32 %v1408, %v1396
    %1417 = vrot.lane.b32.xlu0 %v1409, 127
    %v1418 = vpop.permute.xlu0 %1417
    %1419 = vrot.lane.b32.xlu0 %v1410, 127
    %v1420 = vpop.permute.xlu0 %1419
    %1421 = vrot.lane.b32.xlu0 %v1411, 127
    %v1422 = vpop.permute.xlu0 %1421
    %1423 = vrot.lane.b32.xlu0 %v1412, 127
    %v1424 = vpop.permute.xlu0 %1423
    %v1429 = vadd.f32 %v1403, %v1418
    %v1430 = vadd.f32 %v1404, %v1420
    %v1431 = vadd.f32 %v1405, %v1422
    %v1432 = vadd.f32 %v1406, %v1424
    %s1433 = sld [smem:[#allocation8 + $0x33]]
    %v1434 = vstv %s1433
    %v1435 = vmul.f32 %v1434, %v1393
    %v1436 = vmul.f32 %v1434, %v1394
    %v1437 = vmul.f32 %v1434, %v1395
    %v1438 = vmul.f32 %v1434, %v1396
    %1443 = vrot.lane.b32.xlu0 %v1435, 126
    %v1444 = vpop.permute.xlu0 %1443
    %1445 = vrot.lane.b32.xlu0 %v1436, 126
    %v1446 = vpop.permute.xlu0 %1445
    %1447 = vrot.lane.b32.xlu0 %v1437, 126
    %v1448 = vpop.permute.xlu0 %1447
    %1449 = vrot.lane.b32.xlu0 %v1438, 126
    %v1450 = vpop.permute.xlu0 %1449
    %v1455 = vadd.f32 %v1429, %v1444
    %v1456 = vadd.f32 %v1430, %v1446
    %v1457 = vadd.f32 %v1431, %v1448
    %v1458 = vadd.f32 %v1432, %v1450
    %s1459 = sld [smem:[#allocation8 + $0x34]]
    %v1460 = vstv %s1459
    %v1461 = vmul.f32 %v1460, %v1393
    %v1462 = vmul.f32 %v1460, %v1394
    %v1463 = vmul.f32 %v1460, %v1395
    %v1464 = vmul.f32 %v1460, %v1396
    %1469 = vrot.lane.b32.xlu0 %v1461, 125
    %v1470 = vpop.permute.xlu0 %1469
    %1471 = vrot.lane.b32.xlu0 %v1462, 125
    %v1472 = vpop.permute.xlu0 %1471
    %1473 = vrot.lane.b32.xlu0 %v1463, 125
    %v1474 = vpop.permute.xlu0 %1473
    %1475 = vrot.lane.b32.xlu0 %v1464, 125
    %v1476 = vpop.permute.xlu0 %1475
    %v1481 = vadd.f32 %v1455, %v1470
    %v1482 = vadd.f32 %v1456, %v1472
    %v1483 = vadd.f32 %v1457, %v1474
    %v1484 = vadd.f32 %v1458, %v1476
    %s1485 = sld [smem:[#allocation8 + $0x35]]
    %v1486 = vstv %s1485
    %v1487 = vmul.f32 %v1486, %v1393
    %v1488 = vmul.f32 %v1486, %v1394
    %v1489 = vmul.f32 %v1486, %v1395
    %v1490 = vmul.f32 %v1486, %v1396
    %1495 = vrot.lane.b32.xlu0 %v1487, 124
    %v1496 = vpop.permute.xlu0 %1495
    %1497 = vrot.lane.b32.xlu0 %v1488, 124
    %v1498 = vpop.permute.xlu0 %1497
    %1499 = vrot.lane.b32.xlu0 %v1489, 124
    %v1500 = vpop.permute.xlu0 %1499
    %1501 = vrot.lane.b32.xlu0 %v1490, 124
    %v1502 = vpop.permute.xlu0 %1501
    %v1507 = vadd.f32 %v1481, %v1496
    %v1508 = vadd.f32 %v1482, %v1498
    %v1509 = vadd.f32 %v1483, %v1500
    %v1510 = vadd.f32 %v1484, %v1502
    %s1511 = sld [smem:[#allocation8 + $0x36]]
    %v1512 = vstv %s1511
    %v1513 = vmul.f32 %v1512, %v1393
    %v1514 = vmul.f32 %v1512, %v1394
    %v1515 = vmul.f32 %v1512, %v1395
    %v1516 = vmul.f32 %v1512, %v1396
    %1521 = vrot.lane.b32.xlu0 %v1513, 123
    %v1522 = vpop.permute.xlu0 %1521
    %1523 = vrot.lane.b32.xlu0 %v1514, 123
    %v1524 = vpop.permute.xlu0 %1523
    %1525 = vrot.lane.b32.xlu0 %v1515, 123
    %v1526 = vpop.permute.xlu0 %1525
    %1527 = vrot.lane.b32.xlu0 %v1516, 123
    %v1528 = vpop.permute.xlu0 %1527
    %v1533 = vadd.f32 %v1507, %v1522
    %v1534 = vadd.f32 %v1508, %v1524
    %v1535 = vadd.f32 %v1509, %v1526
    %v1536 = vadd.f32 %v1510, %v1528
    %s1537 = sld [smem:[#allocation8 + $0x37]]
    %v1538 = vstv %s1537
    %v1539 = vmul.f32 %v1538, %v1393
    %v1540 = vmul.f32 %v1538, %v1394
    %v1541 = vmul.f32 %v1538, %v1395
    %v1542 = vmul.f32 %v1538, %v1396
    %1547 = vrot.lane.b32.xlu0 %v1539, 122
    %v1548 = vpop.permute.xlu0 %1547
    %1549 = vrot.lane.b32.xlu0 %v1540, 122
    %v1550 = vpop.permute.xlu0 %1549
    %1551 = vrot.lane.b32.xlu0 %v1541, 122
    %v1552 = vpop.permute.xlu0 %1551
    %1553 = vrot.lane.b32.xlu0 %v1542, 122
    %v1554 = vpop.permute.xlu0 %1553
    %v1559 = vadd.f32 %v1533, %v1548
    %v1560 = vadd.f32 %v1534, %v1550
    %v1561 = vadd.f32 %v1535, %v1552
    %v1562 = vadd.f32 %v1536, %v1554
    %v1563 = vld [vmem:[%s195 + $0x1] sm:$0xff]
    %v1564 = vld [vmem:[%s195 + $0x9] sm:$0xff]
    %v1565 = vld [vmem:[%s195 + $0x19] sm:$0xff]
    %v1566 = vld [vmem:[%s195 + $0x21] sm:$0xff]
    %s1567 = sld [smem:[#allocation8 + $0x38]]
    %v1568 = vstv %s1567
    %v1569 = vmul.f32 %v1568, %v1563
    %v1570 = vmul.f32 %v1568, %v1564
    %v1571 = vmul.f32 %v1568, %v1565
    %v1572 = vmul.f32 %v1568, %v1566
    %v1573 = vadd.f32 %v1559, %v1569
    %v1574 = vadd.f32 %v1560, %v1570
    %v1575 = vadd.f32 %v1561, %v1571
    %v1576 = vadd.f32 %v1562, %v1572
    %s1577 = sld [smem:[#allocation8 + $0x39]]
    %v1578 = vstv %s1577
    %v1579 = vmul.f32 %v1578, %v1563
    %v1580 = vmul.f32 %v1578, %v1564
    %v1581 = vmul.f32 %v1578, %v1565
    %v1582 = vmul.f32 %v1578, %v1566
    %1587 = vrot.lane.b32.xlu0 %v1579, 127
    %v1588 = vpop.permute.xlu0 %1587
    %1589 = vrot.lane.b32.xlu0 %v1580, 127
    %v1590 = vpop.permute.xlu0 %1589
    %1591 = vrot.lane.b32.xlu0 %v1581, 127
    %v1592 = vpop.permute.xlu0 %1591
    %1593 = vrot.lane.b32.xlu0 %v1582, 127
    %v1594 = vpop.permute.xlu0 %1593
    %v1599 = vadd.f32 %v1573, %v1588
    %v1600 = vadd.f32 %v1574, %v1590
    %v1601 = vadd.f32 %v1575, %v1592
    %v1602 = vadd.f32 %v1576, %v1594
    %s1603 = sld [smem:[#allocation8 + $0x3a]]
    %v1604 = vstv %s1603
    %v1605 = vmul.f32 %v1604, %v1563
    %v1606 = vmul.f32 %v1604, %v1564
    %v1607 = vmul.f32 %v1604, %v1565
    %v1608 = vmul.f32 %v1604, %v1566
    %1613 = vrot.lane.b32.xlu0 %v1605, 126
    %v1614 = vpop.permute.xlu0 %1613
    %1615 = vrot.lane.b32.xlu0 %v1606, 126
    %v1616 = vpop.permute.xlu0 %1615
    %1617 = vrot.lane.b32.xlu0 %v1607, 126
    %v1618 = vpop.permute.xlu0 %1617
    %1619 = vrot.lane.b32.xlu0 %v1608, 126
    %v1620 = vpop.permute.xlu0 %1619
    %v1625 = vadd.f32 %v1599, %v1614
    %v1626 = vadd.f32 %v1600, %v1616
    %v1627 = vadd.f32 %v1601, %v1618
    %v1628 = vadd.f32 %v1602, %v1620
    %s1629 = sld [smem:[#allocation8 + $0x3b]]
    %v1630 = vstv %s1629
    %v1631 = vmul.f32 %v1630, %v1563
    %v1632 = vmul.f32 %v1630, %v1564
    %v1633 = vmul.f32 %v1630, %v1565
    %v1634 = vmul.f32 %v1630, %v1566
    %1639 = vrot.lane.b32.xlu0 %v1631, 125
    %v1640 = vpop.permute.xlu0 %1639
    %1641 = vrot.lane.b32.xlu0 %v1632, 125
    %v1642 = vpop.permute.xlu0 %1641
    %1643 = vrot.lane.b32.xlu0 %v1633, 125
    %v1644 = vpop.permute.xlu0 %1643
    %1645 = vrot.lane.b32.xlu0 %v1634, 125
    %v1646 = vpop.permute.xlu0 %1645
    %v1651 = vadd.f32 %v1625, %v1640
    %v1652 = vadd.f32 %v1626, %v1642
    %v1653 = vadd.f32 %v1627, %v1644
    %v1654 = vadd.f32 %v1628, %v1646
    %s1655 = sld [smem:[#allocation8 + $0x3c]]
    %v1656 = vstv %s1655
    %v1657 = vmul.f32 %v1656, %v1563
    %v1658 = vmul.f32 %v1656, %v1564
    %v1659 = vmul.f32 %v1656, %v1565
    %v1660 = vmul.f32 %v1656, %v1566
    %1665 = vrot.lane.b32.xlu0 %v1657, 124
    %v1666 = vpop.permute.xlu0 %1665
    %1667 = vrot.lane.b32.xlu0 %v1658, 124
    %v1668 = vpop.permute.xlu0 %1667
    %1669 = vrot.lane.b32.xlu0 %v1659, 124
    %v1670 = vpop.permute.xlu0 %1669
    %1671 = vrot.lane.b32.xlu0 %v1660, 124
    %v1672 = vpop.permute.xlu0 %1671
    %v1677 = vadd.f32 %v1651, %v1666
    %v1678 = vadd.f32 %v1652, %v1668
    %v1679 = vadd.f32 %v1653, %v1670
    %v1680 = vadd.f32 %v1654, %v1672
    %s1681 = sld [smem:[#allocation8 + $0x3d]]
    %v1682 = vstv %s1681
    %v1683 = vmul.f32 %v1682, %v1563
    %v1684 = vmul.f32 %v1682, %v1564
    %v1685 = vmul.f32 %v1682, %v1565
    %v1686 = vmul.f32 %v1682, %v1566
    %1691 = vrot.lane.b32.xlu0 %v1683, 123
    %v1692 = vpop.permute.xlu0 %1691
    %1693 = vrot.lane.b32.xlu0 %v1684, 123
    %v1694 = vpop.permute.xlu0 %1693
    %1695 = vrot.lane.b32.xlu0 %v1685, 123
    %v1696 = vpop.permute.xlu0 %1695
    %1697 = vrot.lane.b32.xlu0 %v1686, 123
    %v1698 = vpop.permute.xlu0 %1697
    %v1703 = vadd.f32 %v1677, %v1692
    %v1704 = vadd.f32 %v1678, %v1694
    %v1705 = vadd.f32 %v1679, %v1696
    %v1706 = vadd.f32 %v1680, %v1698
    %s1707 = sld [smem:[#allocation8 + $0x3e]]
    %v1708 = vstv %s1707
    %v1709 = vmul.f32 %v1708, %v1563
    %v1710 = vmul.f32 %v1708, %v1564
    %v1711 = vmul.f32 %v1708, %v1565
    %v1712 = vmul.f32 %v1708, %v1566
    %1717 = vrot.lane.b32.xlu0 %v1709, 122
    %v1718 = vpop.permute.xlu0 %1717
    %1719 = vrot.lane.b32.xlu0 %v1710, 122
    %v1720 = vpop.permute.xlu0 %1719
    %1721 = vrot.lane.b32.xlu0 %v1711, 122
    %v1722 = vpop.permute.xlu0 %1721
    %1723 = vrot.lane.b32.xlu0 %v1712, 122
    %v1724 = vpop.permute.xlu0 %1723
    %v1729 = vadd.f32 %v1703, %v1718
    %v1730 = vadd.f32 %v1704, %v1720
    %v1731 = vadd.f32 %v1705, %v1722
    %v1732 = vadd.f32 %v1706, %v1724
    %v1733 = vld [vmem:[%s195 + $0x2] sm:$0xff]
    %v1734 = vld [vmem:[%s195 + $0xa] sm:$0xff]
    %v1735 = vld [vmem:[%s195 + $0x1a] sm:$0xff]
    %v1736 = vld [vmem:[%s195 + $0x22] sm:$0xff]
    %s1737 = sld [smem:[#allocation8 + $0x3f]]
    %v1738 = vstv %s1737
    %v1739 = vmul.f32 %v1738, %v1733
    %v1740 = vmul.f32 %v1738, %v1734
    %v1741 = vmul.f32 %v1738, %v1735
    %v1742 = vmul.f32 %v1738, %v1736
    %v1743 = vadd.f32 %v1729, %v1739
    %v1744 = vadd.f32 %v1730, %v1740
    %v1745 = vadd.f32 %v1731, %v1741
    %v1746 = vadd.f32 %v1732, %v1742
    %s1747 = sld [smem:[#allocation8 + $0x40]]
    %v1748 = vstv %s1747
    %v1749 = vmul.f32 %v1748, %v1733
    %v1750 = vmul.f32 %v1748, %v1734
    %v1751 = vmul.f32 %v1748, %v1735
    %v1752 = vmul.f32 %v1748, %v1736
    %1757 = vrot.lane.b32.xlu0 %v1749, 127
    %v1758 = vpop.permute.xlu0 %1757
    %1759 = vrot.lane.b32.xlu0 %v1750, 127
    %v1760 = vpop.permute.xlu0 %1759
    %1761 = vrot.lane.b32.xlu0 %v1751, 127
    %v1762 = vpop.permute.xlu0 %1761
    %1763 = vrot.lane.b32.xlu0 %v1752, 127
    %v1764 = vpop.permute.xlu0 %1763
    %v1769 = vadd.f32 %v1743, %v1758
    %v1770 = vadd.f32 %v1744, %v1760
    %v1771 = vadd.f32 %v1745, %v1762
    %v1772 = vadd.f32 %v1746, %v1764
    %s1773 = sld [smem:[#allocation8 + $0x41]]
    %v1774 = vstv %s1773
    %v1775 = vmul.f32 %v1774, %v1733
    %v1776 = vmul.f32 %v1774, %v1734
    %v1777 = vmul.f32 %v1774, %v1735
    %v1778 = vmul.f32 %v1774, %v1736
    %1783 = vrot.lane.b32.xlu0 %v1775, 126
    %v1784 = vpop.permute.xlu0 %1783
    %1785 = vrot.lane.b32.xlu0 %v1776, 126
    %v1786 = vpop.permute.xlu0 %1785
    %1787 = vrot.lane.b32.xlu0 %v1777, 126
    %v1788 = vpop.permute.xlu0 %1787
    %1789 = vrot.lane.b32.xlu0 %v1778, 126
    %v1790 = vpop.permute.xlu0 %1789
    %v1795 = vadd.f32 %v1769, %v1784
    %v1796 = vadd.f32 %v1770, %v1786
    %v1797 = vadd.f32 %v1771, %v1788
    %v1798 = vadd.f32 %v1772, %v1790
    %s1799 = sld [smem:[#allocation8 + $0x42]]
    %v1800 = vstv %s1799
    %v1801 = vmul.f32 %v1800, %v1733
    %v1802 = vmul.f32 %v1800, %v1734
    %v1803 = vmul.f32 %v1800, %v1735
    %v1804 = vmul.f32 %v1800, %v1736
    %1809 = vrot.lane.b32.xlu0 %v1801, 125
    %v1810 = vpop.permute.xlu0 %1809
    %1811 = vrot.lane.b32.xlu0 %v1802, 125
    %v1812 = vpop.permute.xlu0 %1811
    %1813 = vrot.lane.b32.xlu0 %v1803, 125
    %v1814 = vpop.permute.xlu0 %1813
    %1815 = vrot.lane.b32.xlu0 %v1804, 125
    %v1816 = vpop.permute.xlu0 %1815
    %v1821 = vadd.f32 %v1795, %v1810
    %v1822 = vadd.f32 %v1796, %v1812
    %v1823 = vadd.f32 %v1797, %v1814
    %v1824 = vadd.f32 %v1798, %v1816
    %s1825 = sld [smem:[#allocation8 + $0x43]]
    %v1826 = vstv %s1825
    %v1827 = vmul.f32 %v1826, %v1733
    %v1828 = vmul.f32 %v1826, %v1734
    %v1829 = vmul.f32 %v1826, %v1735
    %v1830 = vmul.f32 %v1826, %v1736
    %1835 = vrot.lane.b32.xlu0 %v1827, 124
    %v1836 = vpop.permute.xlu0 %1835
    %1837 = vrot.lane.b32.xlu0 %v1828, 124
    %v1838 = vpop.permute.xlu0 %1837
    %1839 = vrot.lane.b32.xlu0 %v1829, 124
    %v1840 = vpop.permute.xlu0 %1839
    %1841 = vrot.lane.b32.xlu0 %v1830, 124
    %v1842 = vpop.permute.xlu0 %1841
    %v1847 = vadd.f32 %v1821, %v1836
    %v1848 = vadd.f32 %v1822, %v1838
    %v1849 = vadd.f32 %v1823, %v1840
    %v1850 = vadd.f32 %v1824, %v1842
    %s1851 = sld [smem:[#allocation8 + $0x44]]
    %v1852 = vstv %s1851
    %v1853 = vmul.f32 %v1852, %v1733
    %v1854 = vmul.f32 %v1852, %v1734
    %v1855 = vmul.f32 %v1852, %v1735
    %v1856 = vmul.f32 %v1852, %v1736
    %1861 = vrot.lane.b32.xlu0 %v1853, 123
    %v1862 = vpop.permute.xlu0 %1861
    %1863 = vrot.lane.b32.xlu0 %v1854, 123
    %v1864 = vpop.permute.xlu0 %1863
    %1865 = vrot.lane.b32.xlu0 %v1855, 123
    %v1866 = vpop.permute.xlu0 %1865
    %1867 = vrot.lane.b32.xlu0 %v1856, 123
    %v1868 = vpop.permute.xlu0 %1867
    %v1873 = vadd.f32 %v1847, %v1862
    %v1874 = vadd.f32 %v1848, %v1864
    %v1875 = vadd.f32 %v1849, %v1866
    %v1876 = vadd.f32 %v1850, %v1868
    %s1877 = sld [smem:[#allocation8 + $0x45]]
    %v1878 = vstv %s1877
    %v1879 = vmul.f32 %v1878, %v1733
    %v1880 = vmul.f32 %v1878, %v1734
    %v1881 = vmul.f32 %v1878, %v1735
    %v1882 = vmul.f32 %v1878, %v1736
    %1887 = vrot.lane.b32.xlu0 %v1879, 122
    %v1888 = vpop.permute.xlu0 %1887
    %1889 = vrot.lane.b32.xlu0 %v1880, 122
    %v1890 = vpop.permute.xlu0 %1889
    %1891 = vrot.lane.b32.xlu0 %v1881, 122
    %v1892 = vpop.permute.xlu0 %1891
    %1893 = vrot.lane.b32.xlu0 %v1882, 122
    %v1894 = vpop.permute.xlu0 %1893
    %v1899 = vadd.f32 %v1873, %v1888
    %v1900 = vadd.f32 %v1874, %v1890
    %v1901 = vadd.f32 %v1875, %v1892
    %v1902 = vadd.f32 %v1876, %v1894
    %v1903 = vld [vmem:[%s195 + $0x3] sm:$0xff]
    %v1904 = vld [vmem:[%s195 + $0xb] sm:$0xff]
    %v1905 = vld [vmem:[%s195 + $0x1b] sm:$0xff]
    %v1906 = vld [vmem:[%s195 + $0x23] sm:$0xff]
    %s1907 = sld [smem:[#allocation8 + $0x46]]
    %v1908 = vstv %s1907
    %v1909 = vmul.f32 %v1908, %v1903
    %v1910 = vmul.f32 %v1908, %v1904
    %v1911 = vmul.f32 %v1908, %v1905
    %v1912 = vmul.f32 %v1908, %v1906
    %v1913 = vadd.f32 %v1899, %v1909
    %v1914 = vadd.f32 %v1900, %v1910
    %v1915 = vadd.f32 %v1901, %v1911
    %v1916 = vadd.f32 %v1902, %v1912
    %s1917 = sld [smem:[#allocation8 + $0x47]]
    %v1918 = vstv %s1917
    %v1919 = vmul.f32 %v1918, %v1903
    %v1920 = vmul.f32 %v1918, %v1904
    %v1921 = vmul.f32 %v1918, %v1905
    %v1922 = vmul.f32 %v1918, %v1906
    %1927 = vrot.lane.b32.xlu0 %v1919, 127
    %v1928 = vpop.permute.xlu0 %1927
    %1929 = vrot.lane.b32.xlu0 %v1920, 127
    %v1930 = vpop.permute.xlu0 %1929
    %1931 = vrot.lane.b32.xlu0 %v1921, 127
    %v1932 = vpop.permute.xlu0 %1931
    %1933 = vrot.lane.b32.xlu0 %v1922, 127
    %v1934 = vpop.permute.xlu0 %1933
    %v1939 = vadd.f32 %v1913, %v1928
    %v1940 = vadd.f32 %v1914, %v1930
    %v1941 = vadd.f32 %v1915, %v1932
    %v1942 = vadd.f32 %v1916, %v1934
    %s1943 = sld [smem:[#allocation8 + $0x48]]
    %v1944 = vstv %s1943
    %v1945 = vmul.f32 %v1944, %v1903
    %v1946 = vmul.f32 %v1944, %v1904
    %v1947 = vmul.f32 %v1944, %v1905
    %v1948 = vmul.f32 %v1944, %v1906
    %1953 = vrot.lane.b32.xlu0 %v1945, 126
    %v1954 = vpop.permute.xlu0 %1953
    %1955 = vrot.lane.b32.xlu0 %v1946, 126
    %v1956 = vpop.permute.xlu0 %1955
    %1957 = vrot.lane.b32.xlu0 %v1947, 126
    %v1958 = vpop.permute.xlu0 %1957
    %1959 = vrot.lane.b32.xlu0 %v1948, 126
    %v1960 = vpop.permute.xlu0 %1959
    %v1965 = vadd.f32 %v1939, %v1954
    %v1966 = vadd.f32 %v1940, %v1956
    %v1967 = vadd.f32 %v1941, %v1958
    %v1968 = vadd.f32 %v1942, %v1960
    %s1969 = sld [smem:[#allocation8 + $0x49]]
    %v1970 = vstv %s1969
    %v1971 = vmul.f32 %v1970, %v1903
    %v1972 = vmul.f32 %v1970, %v1904
    %v1973 = vmul.f32 %v1970, %v1905
    %v1974 = vmul.f32 %v1970, %v1906
    %1979 = vrot.lane.b32.xlu0 %v1971, 125
    %v1980 = vpop.permute.xlu0 %1979
    %1981 = vrot.lane.b32.xlu0 %v1972, 125
    %v1982 = vpop.permute.xlu0 %1981
    %1983 = vrot.lane.b32.xlu0 %v1973, 125
    %v1984 = vpop.permute.xlu0 %1983
    %1985 = vrot.lane.b32.xlu0 %v1974, 125
    %v1986 = vpop.permute.xlu0 %1985
    %v1991 = vadd.f32 %v1965, %v1980
    %v1992 = vadd.f32 %v1966, %v1982
    %v1993 = vadd.f32 %v1967, %v1984
    %v1994 = vadd.f32 %v1968, %v1986
    %s1995 = sld [smem:[#allocation8 + $0x4a]]
    %v1996 = vstv %s1995
    %v1997 = vmul.f32 %v1996, %v1903
    %v1998 = vmul.f32 %v1996, %v1904
    %v1999 = vmul.f32 %v1996, %v1905
    %v2000 = vmul.f32 %v1996, %v1906
    %2005 = vrot.lane.b32.xlu0 %v1997, 124
    %v2006 = vpop.permute.xlu0 %2005
    %2007 = vrot.lane.b32.xlu0 %v1998, 124
    %v2008 = vpop.permute.xlu0 %2007
    %2009 = vrot.lane.b32.xlu0 %v1999, 124
    %v2010 = vpop.permute.xlu0 %2009
    %2011 = vrot.lane.b32.xlu0 %v2000, 124
    %v2012 = vpop.permute.xlu0 %2011
    %v2017 = vadd.f32 %v1991, %v2006
    %v2018 = vadd.f32 %v1992, %v2008
    %v2019 = vadd.f32 %v1993, %v2010
    %v2020 = vadd.f32 %v1994, %v2012
    %s2021 = sld [smem:[#allocation8 + $0x4b]]
    %v2022 = vstv %s2021
    %v2023 = vmul.f32 %v2022, %v1903
    %v2024 = vmul.f32 %v2022, %v1904
    %v2025 = vmul.f32 %v2022, %v1905
    %v2026 = vmul.f32 %v2022, %v1906
    %2031 = vrot.lane.b32.xlu0 %v2023, 123
    %v2032 = vpop.permute.xlu0 %2031
    %2033 = vrot.lane.b32.xlu0 %v2024, 123
    %v2034 = vpop.permute.xlu0 %2033
    %2035 = vrot.lane.b32.xlu0 %v2025, 123
    %v2036 = vpop.permute.xlu0 %2035
    %2037 = vrot.lane.b32.xlu0 %v2026, 123
    %v2038 = vpop.permute.xlu0 %2037
    %v2043 = vadd.f32 %v2017, %v2032
    %v2044 = vadd.f32 %v2018, %v2034
    %v2045 = vadd.f32 %v2019, %v2036
    %v2046 = vadd.f32 %v2020, %v2038
    %s2047 = sld [smem:[#allocation8 + $0x4c]]
    %v2048 = vstv %s2047
    %v2049 = vmul.f32 %v2048, %v1903
    %v2050 = vmul.f32 %v2048, %v1904
    %v2051 = vmul.f32 %v2048, %v1905
    %v2052 = vmul.f32 %v2048, %v1906
    %2057 = vrot.lane.b32.xlu0 %v2049, 122
    %v2058 = vpop.permute.xlu0 %2057
    %2059 = vrot.lane.b32.xlu0 %v2050, 122
    %v2060 = vpop.permute.xlu0 %2059
    %2061 = vrot.lane.b32.xlu0 %v2051, 122
    %v2062 = vpop.permute.xlu0 %2061
    %2063 = vrot.lane.b32.xlu0 %v2052, 122
    %v2064 = vpop.permute.xlu0 %2063
    %v2069 = vadd.f32 %v2043, %v2058
    %v2070 = vadd.f32 %v2044, %v2060
    %v2071 = vadd.f32 %v2045, %v2062
    %v2072 = vadd.f32 %v2046, %v2064
    %v2073 = vld [vmem:[%s195 + $0x4] sm:$0xff]
    %v2074 = vld [vmem:[%s195 + $0xc] sm:$0xff]
    %v2075 = vld [vmem:[%s195 + $0x1c] sm:$0xff]
    %v2076 = vld [vmem:[%s195 + $0x24] sm:$0xff]
    %s2077 = sld [smem:[#allocation8 + $0x4d]]
    %v2078 = vstv %s2077
    %v2079 = vmul.f32 %v2078, %v2073
    %v2080 = vmul.f32 %v2078, %v2074
    %v2081 = vmul.f32 %v2078, %v2075
    %v2082 = vmul.f32 %v2078, %v2076
    %v2083 = vadd.f32 %v2069, %v2079
    %v2084 = vadd.f32 %v2070, %v2080
    %v2085 = vadd.f32 %v2071, %v2081
    %v2086 = vadd.f32 %v2072, %v2082
    %s2087 = sld [smem:[#allocation8 + $0x4e]]
    %v2088 = vstv %s2087
    %v2089 = vmul.f32 %v2088, %v2073
    %v2090 = vmul.f32 %v2088, %v2074
    %v2091 = vmul.f32 %v2088, %v2075
    %v2092 = vmul.f32 %v2088, %v2076
    %2097 = vrot.lane.b32.xlu0 %v2089, 127
    %v2098 = vpop.permute.xlu0 %2097
    %2099 = vrot.lane.b32.xlu0 %v2090, 127
    %v2100 = vpop.permute.xlu0 %2099
    %2101 = vrot.lane.b32.xlu0 %v2091, 127
    %v2102 = vpop.permute.xlu0 %2101
    %2103 = vrot.lane.b32.xlu0 %v2092, 127
    %v2104 = vpop.permute.xlu0 %2103
    %v2109 = vadd.f32 %v2083, %v2098
    %v2110 = vadd.f32 %v2084, %v2100
    %v2111 = vadd.f32 %v2085, %v2102
    %v2112 = vadd.f32 %v2086, %v2104
    %s2113 = sld [smem:[#allocation8 + $0x4f]]
    %v2114 = vstv %s2113
    %v2115 = vmul.f32 %v2114, %v2073
    %v2116 = vmul.f32 %v2114, %v2074
    %v2117 = vmul.f32 %v2114, %v2075
    %v2118 = vmul.f32 %v2114, %v2076
    %2123 = vrot.lane.b32.xlu0 %v2115, 126
    %v2124 = vpop.permute.xlu0 %2123
    %2125 = vrot.lane.b32.xlu0 %v2116, 126
    %v2126 = vpop.permute.xlu0 %2125
    %2127 = vrot.lane.b32.xlu0 %v2117, 126
    %v2128 = vpop.permute.xlu0 %2127
    %2129 = vrot.lane.b32.xlu0 %v2118, 126
    %v2130 = vpop.permute.xlu0 %2129
    %v2135 = vadd.f32 %v2109, %v2124
    %v2136 = vadd.f32 %v2110, %v2126
    %v2137 = vadd.f32 %v2111, %v2128
    %v2138 = vadd.f32 %v2112, %v2130
    %s2139 = sld [smem:[#allocation8 + $0x50]]
    %v2140 = vstv %s2139
    %v2141 = vmul.f32 %v2140, %v2073
    %v2142 = vmul.f32 %v2140, %v2074
    %v2143 = vmul.f32 %v2140, %v2075
    %v2144 = vmul.f32 %v2140, %v2076
    %2149 = vrot.lane.b32.xlu0 %v2141, 125
    %v2150 = vpop.permute.xlu0 %2149
    %2151 = vrot.lane.b32.xlu0 %v2142, 125
    %v2152 = vpop.permute.xlu0 %2151
    %2153 = vrot.lane.b32.xlu0 %v2143, 125
    %v2154 = vpop.permute.xlu0 %2153
    %2155 = vrot.lane.b32.xlu0 %v2144, 125
    %v2156 = vpop.permute.xlu0 %2155
    %v2161 = vadd.f32 %v2135, %v2150
    %v2162 = vadd.f32 %v2136, %v2152
    %v2163 = vadd.f32 %v2137, %v2154
    %v2164 = vadd.f32 %v2138, %v2156
    %s2165 = sld [smem:[#allocation8 + $0x51]]
    %v2166 = vstv %s2165
    %v2167 = vmul.f32 %v2166, %v2073
    %v2168 = vmul.f32 %v2166, %v2074
    %v2169 = vmul.f32 %v2166, %v2075
    %v2170 = vmul.f32 %v2166, %v2076
    %2175 = vrot.lane.b32.xlu0 %v2167, 124
    %v2176 = vpop.permute.xlu0 %2175
    %2177 = vrot.lane.b32.xlu0 %v2168, 124
    %v2178 = vpop.permute.xlu0 %2177
    %2179 = vrot.lane.b32.xlu0 %v2169, 124
    %v2180 = vpop.permute.xlu0 %2179
    %2181 = vrot.lane.b32.xlu0 %v2170, 124
    %v2182 = vpop.permute.xlu0 %2181
    %v2187 = vadd.f32 %v2161, %v2176
    %v2188 = vadd.f32 %v2162, %v2178
    %v2189 = vadd.f32 %v2163, %v2180
    %v2190 = vadd.f32 %v2164, %v2182
    %s2191 = sld [smem:[#allocation8 + $0x52]]
    %v2192 = vstv %s2191
    %v2193 = vmul.f32 %v2192, %v2073
    %v2194 = vmul.f32 %v2192, %v2074
    %v2195 = vmul.f32 %v2192, %v2075
    %v2196 = vmul.f32 %v2192, %v2076
    %2201 = vrot.lane.b32.xlu0 %v2193, 123
    %v2202 = vpop.permute.xlu0 %2201
    %2203 = vrot.lane.b32.xlu0 %v2194, 123
    %v2204 = vpop.permute.xlu0 %2203
    %2205 = vrot.lane.b32.xlu0 %v2195, 123
    %v2206 = vpop.permute.xlu0 %2205
    %2207 = vrot.lane.b32.xlu0 %v2196, 123
    %v2208 = vpop.permute.xlu0 %2207
    %v2213 = vadd.f32 %v2187, %v2202
    %v2214 = vadd.f32 %v2188, %v2204
    %v2215 = vadd.f32 %v2189, %v2206
    %v2216 = vadd.f32 %v2190, %v2208
    %s2217 = sld [smem:[#allocation8 + $0x53]]
    %v2218 = vstv %s2217
    %v2219 = vmul.f32 %v2218, %v2073
    %v2220 = vmul.f32 %v2218, %v2074
    %v2221 = vmul.f32 %v2218, %v2075
    %v2222 = vmul.f32 %v2218, %v2076
    %2227 = vrot.lane.b32.xlu0 %v2219, 122
    %v2228 = vpop.permute.xlu0 %2227
    %2229 = vrot.lane.b32.xlu0 %v2220, 122
    %v2230 = vpop.permute.xlu0 %2229
    %2231 = vrot.lane.b32.xlu0 %v2221, 122
    %v2232 = vpop.permute.xlu0 %2231
    %2233 = vrot.lane.b32.xlu0 %v2222, 122
    %v2234 = vpop.permute.xlu0 %2233
    %v2239 = vadd.f32 %v2213, %v2228
    %v2240 = vadd.f32 %v2214, %v2230
    %v2241 = vadd.f32 %v2215, %v2232
    %v2242 = vadd.f32 %v2216, %v2234
    %v2243 = vld [vmem:[%s195 + $0x5] sm:$0xff]
    %v2244 = vld [vmem:[%s195 + $0xd] sm:$0xff]
    %v2245 = vld [vmem:[%s195 + $0x1d] sm:$0xff]
    %v2246 = vld [vmem:[%s195 + $0x25] sm:$0xff]
    %s2247 = sld [smem:[#allocation8 + $0x54]]
    %v2248 = vstv %s2247
    %v2249 = vmul.f32 %v2248, %v2243
    %v2250 = vmul.f32 %v2248, %v2244
    %v2251 = vmul.f32 %v2248, %v2245
    %v2252 = vmul.f32 %v2248, %v2246
    %v2253 = vadd.f32 %v2239, %v2249
    %v2254 = vadd.f32 %v2240, %v2250
    %v2255 = vadd.f32 %v2241, %v2251
    %v2256 = vadd.f32 %v2242, %v2252
    %s2257 = sld [smem:[#allocation8 + $0x55]]
    %v2258 = vstv %s2257
    %v2259 = vmul.f32 %v2258, %v2243
    %v2260 = vmul.f32 %v2258, %v2244
    %v2261 = vmul.f32 %v2258, %v2245
    %v2262 = vmul.f32 %v2258, %v2246
    %2267 = vrot.lane.b32.xlu0 %v2259, 127
    %v2268 = vpop.permute.xlu0 %2267
    %2269 = vrot.lane.b32.xlu0 %v2260, 127
    %v2270 = vpop.permute.xlu0 %2269
    %2271 = vrot.lane.b32.xlu0 %v2261, 127
    %v2272 = vpop.permute.xlu0 %2271
    %2273 = vrot.lane.b32.xlu0 %v2262, 127
    %v2274 = vpop.permute.xlu0 %2273
    %v2279 = vadd.f32 %v2253, %v2268
    %v2280 = vadd.f32 %v2254, %v2270
    %v2281 = vadd.f32 %v2255, %v2272
    %v2282 = vadd.f32 %v2256, %v2274
    %s2283 = sld [smem:[#allocation8 + $0x56]]
    %v2284 = vstv %s2283
    %v2285 = vmul.f32 %v2284, %v2243
    %v2286 = vmul.f32 %v2284, %v2244
    %v2287 = vmul.f32 %v2284, %v2245
    %v2288 = vmul.f32 %v2284, %v2246
    %2293 = vrot.lane.b32.xlu0 %v2285, 126
    %v2294 = vpop.permute.xlu0 %2293
    %2295 = vrot.lane.b32.xlu0 %v2286, 126
    %v2296 = vpop.permute.xlu0 %2295
    %2297 = vrot.lane.b32.xlu0 %v2287, 126
    %v2298 = vpop.permute.xlu0 %2297
    %2299 = vrot.lane.b32.xlu0 %v2288, 126
    %v2300 = vpop.permute.xlu0 %2299
    %v2305 = vadd.f32 %v2279, %v2294
    %v2306 = vadd.f32 %v2280, %v2296
    %v2307 = vadd.f32 %v2281, %v2298
    %v2308 = vadd.f32 %v2282, %v2300
    %s2309 = sld [smem:[#allocation8 + $0x57]]
    %v2310 = vstv %s2309
    %v2311 = vmul.f32 %v2310, %v2243
    %v2312 = vmul.f32 %v2310, %v2244
    %v2313 = vmul.f32 %v2310, %v2245
    %v2314 = vmul.f32 %v2310, %v2246
    %2319 = vrot.lane.b32.xlu0 %v2311, 125
    %v2320 = vpop.permute.xlu0 %2319
    %2321 = vrot.lane.b32.xlu0 %v2312, 125
    %v2322 = vpop.permute.xlu0 %2321
    %2323 = vrot.lane.b32.xlu0 %v2313, 125
    %v2324 = vpop.permute.xlu0 %2323
    %2325 = vrot.lane.b32.xlu0 %v2314, 125
    %v2326 = vpop.permute.xlu0 %2325
    %v2331 = vadd.f32 %v2305, %v2320
    %v2332 = vadd.f32 %v2306, %v2322
    %v2333 = vadd.f32 %v2307, %v2324
    %v2334 = vadd.f32 %v2308, %v2326
    %s2335 = sld [smem:[#allocation8 + $0x58]]
    %v2336 = vstv %s2335
    %v2337 = vmul.f32 %v2336, %v2243
    %v2338 = vmul.f32 %v2336, %v2244
    %v2339 = vmul.f32 %v2336, %v2245
    %v2340 = vmul.f32 %v2336, %v2246
    %2345 = vrot.lane.b32.xlu0 %v2337, 124
    %v2346 = vpop.permute.xlu0 %2345
    %2347 = vrot.lane.b32.xlu0 %v2338, 124
    %v2348 = vpop.permute.xlu0 %2347
    %2349 = vrot.lane.b32.xlu0 %v2339, 124
    %v2350 = vpop.permute.xlu0 %2349
    %2351 = vrot.lane.b32.xlu0 %v2340, 124
    %v2352 = vpop.permute.xlu0 %2351
    %v2357 = vadd.f32 %v2331, %v2346
    %v2358 = vadd.f32 %v2332, %v2348
    %v2359 = vadd.f32 %v2333, %v2350
    %v2360 = vadd.f32 %v2334, %v2352
    %s2361 = sld [smem:[#allocation8 + $0x59]]
    %v2362 = vstv %s2361
    %v2363 = vmul.f32 %v2362, %v2243
    %v2364 = vmul.f32 %v2362, %v2244
    %v2365 = vmul.f32 %v2362, %v2245
    %v2366 = vmul.f32 %v2362, %v2246
    %2371 = vrot.lane.b32.xlu0 %v2363, 123
    %v2372 = vpop.permute.xlu0 %2371
    %2373 = vrot.lane.b32.xlu0 %v2364, 123
    %v2374 = vpop.permute.xlu0 %2373
    %2375 = vrot.lane.b32.xlu0 %v2365, 123
    %v2376 = vpop.permute.xlu0 %2375
    %2377 = vrot.lane.b32.xlu0 %v2366, 123
    %v2378 = vpop.permute.xlu0 %2377
    %v2383 = vadd.f32 %v2357, %v2372
    %v2384 = vadd.f32 %v2358, %v2374
    %v2385 = vadd.f32 %v2359, %v2376
    %v2386 = vadd.f32 %v2360, %v2378
    %s2387 = sld [smem:[#allocation8 + $0x5a]]
    %v2388 = vstv %s2387
    %v2389 = vmul.f32 %v2388, %v2243
    %v2390 = vmul.f32 %v2388, %v2244
    %v2391 = vmul.f32 %v2388, %v2245
    %v2392 = vmul.f32 %v2388, %v2246
    %2397 = vrot.lane.b32.xlu0 %v2389, 122
    %v2398 = vpop.permute.xlu0 %2397
    %2399 = vrot.lane.b32.xlu0 %v2390, 122
    %v2400 = vpop.permute.xlu0 %2399
    %2401 = vrot.lane.b32.xlu0 %v2391, 122
    %v2402 = vpop.permute.xlu0 %2401
    %2403 = vrot.lane.b32.xlu0 %v2392, 122
    %v2404 = vpop.permute.xlu0 %2403
    %v2409 = vadd.f32 %v2383, %v2398
    %v2410 = vadd.f32 %v2384, %v2400
    %v2411 = vadd.f32 %v2385, %v2402
    %v2412 = vadd.f32 %v2386, %v2404
    %v2413 = vld [vmem:[%s195 + $0x6] sm:$0xff]
    %v2414 = vld [vmem:[%s195 + $0xe] sm:$0xff]
    %v2415 = vld [vmem:[%s195 + $0x1e] sm:$0xff]
    %v2416 = vld [vmem:[%s195 + $0x26] sm:$0xff]
    %s2417 = sld [smem:[#allocation8 + $0x5b]]
    %v2418 = vstv %s2417
    %v2419 = vmul.f32 %v2418, %v2413
    %v2420 = vmul.f32 %v2418, %v2414
    %v2421 = vmul.f32 %v2418, %v2415
    %v2422 = vmul.f32 %v2418, %v2416
    %v2423 = vadd.f32 %v2409, %v2419
    %v2424 = vadd.f32 %v2410, %v2420
    %v2425 = vadd.f32 %v2411, %v2421
    %v2426 = vadd.f32 %v2412, %v2422
    %s2427 = sld [smem:[#allocation8 + $0x5c]]
    %v2428 = vstv %s2427
    %v2429 = vmul.f32 %v2428, %v2413
    %v2430 = vmul.f32 %v2428, %v2414
    %v2431 = vmul.f32 %v2428, %v2415
    %v2432 = vmul.f32 %v2428, %v2416
    %2437 = vrot.lane.b32.xlu0 %v2429, 127
    %v2438 = vpop.permute.xlu0 %2437
    %2439 = vrot.lane.b32.xlu0 %v2430, 127
    %v2440 = vpop.permute.xlu0 %2439
    %2441 = vrot.lane.b32.xlu0 %v2431, 127
    %v2442 = vpop.permute.xlu0 %2441
    %2443 = vrot.lane.b32.xlu0 %v2432, 127
    %v2444 = vpop.permute.xlu0 %2443
    %v2449 = vadd.f32 %v2423, %v2438
    %v2450 = vadd.f32 %v2424, %v2440
    %v2451 = vadd.f32 %v2425, %v2442
    %v2452 = vadd.f32 %v2426, %v2444
    %s2453 = sld [smem:[#allocation8 + $0x5d]]
    %v2454 = vstv %s2453
    %v2455 = vmul.f32 %v2454, %v2413
    %v2456 = vmul.f32 %v2454, %v2414
    %v2457 = vmul.f32 %v2454, %v2415
    %v2458 = vmul.f32 %v2454, %v2416
    %2463 = vrot.lane.b32.xlu0 %v2455, 126
    %v2464 = vpop.permute.xlu0 %2463
    %2465 = vrot.lane.b32.xlu0 %v2456, 126
    %v2466 = vpop.permute.xlu0 %2465
    %2467 = vrot.lane.b32.xlu0 %v2457, 126
    %v2468 = vpop.permute.xlu0 %2467
    %2469 = vrot.lane.b32.xlu0 %v2458, 126
    %v2470 = vpop.permute.xlu0 %2469
    %v2475 = vadd.f32 %v2449, %v2464
    %v2476 = vadd.f32 %v2450, %v2466
    %v2477 = vadd.f32 %v2451, %v2468
    %v2478 = vadd.f32 %v2452, %v2470
    %s2479 = sld [smem:[#allocation8 + $0x5e]]
    %v2480 = vstv %s2479
    %v2481 = vmul.f32 %v2480, %v2413
    %v2482 = vmul.f32 %v2480, %v2414
    %v2483 = vmul.f32 %v2480, %v2415
    %v2484 = vmul.f32 %v2480, %v2416
    %2489 = vrot.lane.b32.xlu0 %v2481, 125
    %v2490 = vpop.permute.xlu0 %2489
    %2491 = vrot.lane.b32.xlu0 %v2482, 125
    %v2492 = vpop.permute.xlu0 %2491
    %2493 = vrot.lane.b32.xlu0 %v2483, 125
    %v2494 = vpop.permute.xlu0 %2493
    %2495 = vrot.lane.b32.xlu0 %v2484, 125
    %v2496 = vpop.permute.xlu0 %2495
    %v2501 = vadd.f32 %v2475, %v2490
    %v2502 = vadd.f32 %v2476, %v2492
    %v2503 = vadd.f32 %v2477, %v2494
    %v2504 = vadd.f32 %v2478, %v2496
    %s2505 = sld [smem:[#allocation8 + $0x5f]]
    %v2506 = vstv %s2505
    %v2507 = vmul.f32 %v2506, %v2413
    %v2508 = vmul.f32 %v2506, %v2414
    %v2509 = vmul.f32 %v2506, %v2415
    %v2510 = vmul.f32 %v2506, %v2416
    %2515 = vrot.lane.b32.xlu0 %v2507, 124
    %v2516 = vpop.permute.xlu0 %2515
    %2517 = vrot.lane.b32.xlu0 %v2508, 124
    %v2518 = vpop.permute.xlu0 %2517
    %2519 = vrot.lane.b32.xlu0 %v2509, 124
    %v2520 = vpop.permute.xlu0 %2519
    %2521 = vrot.lane.b32.xlu0 %v2510, 124
    %v2522 = vpop.permute.xlu0 %2521
    %v2527 = vadd.f32 %v2501, %v2516
    %v2528 = vadd.f32 %v2502, %v2518
    %v2529 = vadd.f32 %v2503, %v2520
    %v2530 = vadd.f32 %v2504, %v2522
    %s2531 = sld [smem:[#allocation8 + $0x60]]
    %v2532 = vstv %s2531
    %v2533 = vmul.f32 %v2532, %v2413
    %v2534 = vmul.f32 %v2532, %v2414
    %v2535 = vmul.f32 %v2532, %v2415
    %v2536 = vmul.f32 %v2532, %v2416
    %2541 = vrot.lane.b32.xlu0 %v2533, 123
    %v2542 = vpop.permute.xlu0 %2541
    %2543 = vrot.lane.b32.xlu0 %v2534, 123
    %v2544 = vpop.permute.xlu0 %2543
    %2545 = vrot.lane.b32.xlu0 %v2535, 123
    %v2546 = vpop.permute.xlu0 %2545
    %2547 = vrot.lane.b32.xlu0 %v2536, 123
    %v2548 = vpop.permute.xlu0 %2547
    %v2553 = vadd.f32 %v2527, %v2542
    %v2554 = vadd.f32 %v2528, %v2544
    %v2555 = vadd.f32 %v2529, %v2546
    %v2556 = vadd.f32 %v2530, %v2548
    %s2557 = sld [smem:[#allocation8 + $0x61]]
    %v2558 = vstv %s2557
    %v2559 = vmul.f32 %v2558, %v2413
    %v2560 = vmul.f32 %v2558, %v2414
    %v2561 = vmul.f32 %v2558, %v2415
    %v2562 = vmul.f32 %v2558, %v2416
    %2567 = vrot.lane.b32.xlu0 %v2559, 122
    %v2568 = vpop.permute.xlu0 %2567
    %2569 = vrot.lane.b32.xlu0 %v2560, 122
    %v2570 = vpop.permute.xlu0 %2569
    %2571 = vrot.lane.b32.xlu0 %v2561, 122
    %v2572 = vpop.permute.xlu0 %2571
    %2573 = vrot.lane.b32.xlu0 %v2562, 122
    %v2574 = vpop.permute.xlu0 %2573
    %v2579 = vadd.f32 %v2553, %v2568
    %v2580 = vadd.f32 %v2554, %v2570
    %v2581 = vadd.f32 %v2555, %v2572
    %v2582 = vadd.f32 %v2556, %v2574
    %v2583 = vsub.f32 0.0, %v2579
    %v2584 = vsub.f32 0.0, %v2580
    %v2585 = vsub.f32 0.0, %v2581
    %v2586 = vsub.f32 0.0, %v2582
    %v2587 = vmul.f32 %v2583, 1.442695
    %v2588 = vpow.pop %v2587
    %v2589 = vmul.f32 %v2584, 1.442695
    %v2590 = vpow.pop %v2589
    %v2591 = vmul.f32 %v2585, 1.442695
    %v2592 = vpow.pop %v2591
    %v2593 = vmul.f32 %v2586, 1.442695
    %v2594 = vpow.pop %v2593
    %v2595 = vadd.f32 %v2588, 1.0
    %v2596 = vadd.f32 %v2590, 1.0
    %v2597 = vadd.f32 %v2592, 1.0
    %v2598 = vadd.f32 %v2594, 1.0
    %v2599 = vrcp.pop %v2595
    %v2600 = vrcp.pop %v2596
    %v2601 = vrcp.pop %v2597
    %v2602 = vrcp.pop %v2598
    %v2603 = vld [vmem:[#allocation4] sm:$0xff]
    %v2604 = vld [vmem:[#allocation4 + $0x8] sm:$0xff]
    %v2605 = vld [vmem:[#allocation4 + $0x10] sm:$0xff]
    %v2606 = vld [vmem:[#allocation4 + $0x18] sm:$0xff]
    %v2607 = vld [vmem:[#allocation4 + $0x20] sm:$0xff]
    %v2608 = vld [vmem:[#allocation4 + $0x28] sm:$0xff]
    %v2609 = vld [vmem:[#allocation4 + $0x30] sm:$0xff]
    %v2610 = vld [vmem:[#allocation4 + $0x38] sm:$0xff]
    %v2611 = vld [vmem:[#allocation4 + $0x40] sm:$0xff]
    %v2612 = vld [vmem:[#allocation4 + $0x48] sm:$0xff]
    %v2613 = vld [vmem:[#allocation4 + $0x50] sm:$0xff]
    %v2614 = vld [vmem:[#allocation4 + $0x58] sm:$0xff]
    %v2615 = vld [vmem:[#allocation4 + $0x60] sm:$0xff]
    %v2616 = vld [vmem:[#allocation4 + $0x68] sm:$0xff]
    %v2617 = vld [vmem:[#allocation4 + $0x70] sm:$0xff]
    %v2618 = vld [vmem:[#allocation4 + $0x78] sm:$0xff]
    %v2619 = vmul.f32 %v2599, %v2603
    %v2620 = vmul.f32 %v2600, %v2604
    %v2621 = vmul.f32 %v2599, %v2605
    %v2622 = vmul.f32 %v2600, %v2606
    %v2623 = vmul.f32 %v2599, %v2607
    %v2624 = vmul.f32 %v2600, %v2608
    %v2625 = vmul.f32 %v2599, %v2609
    %v2626 = vmul.f32 %v2600, %v2610
    %v2627 = vmul.f32 %v2601, %v2611
    %v2628 = vmul.f32 %v2602, %v2612
    %v2629 = vmul.f32 %v2601, %v2613
    %v2630 = vmul.f32 %v2602, %v2614
    %v2631 = vmul.f32 %v2601, %v2615
    %v2632 = vmul.f32 %v2602, %v2616
    %v2633 = vmul.f32 %v2601, %v2617
    %v2634 = vmul.f32 %v2602, %v2618
    %2635 = vst.msk [vmem:[#allocation9] sm:$0xff] %vm59, %v2619
    %2636 = vst.msk [vmem:[#allocation9 + $0x8] sm:$0xff] %vm59, %v2620
    %2637 = vst.msk [vmem:[#allocation9 + $0x10] sm:$0xff] %vm59, %v2621
    %2638 = vst.msk [vmem:[#allocation9 + $0x18] sm:$0xff] %vm59, %v2622
    %2639 = vst.msk [vmem:[#allocation9 + $0x20] sm:$0xff] %vm59, %v2623
    %2640 = vst.msk [vmem:[#allocation9 + $0x28] sm:$0xff] %vm59, %v2624
    %2641 = vst.msk [vmem:[#allocation9 + $0x30] sm:$0xff] %vm59, %v2625
    %2642 = vst.msk [vmem:[#allocation9 + $0x38] sm:$0xff] %vm59, %v2626
    %2643 = vst.msk [vmem:[#allocation9 + $0x40] sm:$0xff] %vm59, %v2627
    %2644 = vst.msk [vmem:[#allocation9 + $0x48] sm:$0xff] %vm59, %v2628
    %2645 = vst.msk [vmem:[#allocation9 + $0x50] sm:$0xff] %vm59, %v2629
    %2646 = vst.msk [vmem:[#allocation9 + $0x58] sm:$0xff] %vm59, %v2630
    %2647 = vst.msk [vmem:[#allocation9 + $0x60] sm:$0xff] %vm59, %v2631
    %2648 = vst.msk [vmem:[#allocation9 + $0x68] sm:$0xff] %vm59, %v2632
    %2649 = vst.msk [vmem:[#allocation9 + $0x70] sm:$0xff] %vm59, %v2633
    %2650 = vst.msk [vmem:[#allocation9 + $0x78] sm:$0xff] %vm59, %v2634
    // Predicated region
    $region22: #{tpu_custom_call.1} parent=1 // pred_check
      _
    $region23: #{tpu_custom_call.1} parent=1 // pred_check_branch
      %2652 = sbr.rel (0) target = $region25
    $region24: #{tpu_custom_call.1} parent=1 // pred_region
      %s2654 = ssub.s32 2048, 2048
      %2655 = vsyncadd [#allocation6], %s2654
      %s2656 = sshll.u32 [#allocation9], 4
      %s2657 = int_to_ptr.vmem [resolvable:$true] %s2656
      %2662 = dma.vmem_to_hbm [thread:$0]  %s2657, 2048, %s3, [#allocation6], 128, 128, 8
    $region25: #{tpu_custom_call.1} parent=1 // pred_fallthru
      _
    // Predicated region
    $region26: #{tpu_custom_call.1} parent=1 // pred_check
      _
    $region27: #{tpu_custom_call.1} parent=1 // pred_check_branch
      %2664 = sbr.rel (0) target = $region29
    $region28: #{tpu_custom_call.1} parent=1 // pred_region
      %2665 = dma.done [#allocation6], 2048
    $region29: #{tpu_custom_call.1} parent=1 // pred_fallthru
      _
    %2666 = vsyncpa [#allocation5], 1
    %2667 = vsyncpa [#allocation6], 1
    %2668 = vsyncpa [#allocation7], 1

</llo_original>
